<compile_context>
chip_gen: v5e
topology: v5e:2x2
jax: 0.10.0
libtpu: 0.0.40
codegen_flags: <defaults>
</compile_context>

<pallas_src>
import functools

import jax
import jax.numpy as jnp
from jax.experimental import pallas as pl
from jax.experimental.pallas import tpu as pltpu


def _round_up(x: int, m: int) -> int:
    return ((x + m - 1) // m) * m


def _ild_kernel(amax_ref, tau_ref, s1_ref, s2_ref, e1_out, e2_out,
                e1_acc, e2_acc, *, T, TT, acc_w, n_k_half, n_k_total):
    i = pl.program_id(0)          # batch tile                (parallel)
    h = pl.program_id(1)          # time half                 (parallel)
    k = pl.program_id(2)          # time tile within the half (arbitrary/reduction)
    kk = h * n_k_half + k         # global time-tile index
    t0 = kk * TT                  # global start sample of this tile

    TB = s1_ref.shape[0]
    n_chunks = TT // acc_w

    @pl.when(k == 0)
    def _init():
        e1_acc[...] = jnp.zeros_like(e1_acc)
        e2_acc[...] = jnp.zeros_like(e2_acc)

    # Per-row valid windows induced by the truncating shift:
    #   s1: [max(tau,0), T + min(tau,0))     s2: [max(-tau,0), T - max(tau,0))
    # Their intersection over the rows of this batch tile is [a, T - a) with
    # a = max_row|tau| (scalar-prefetched).  Interior tiles need no masks.
    a = amax_ref[i]
    fully_valid = (t0 >= a) & (t0 + TT <= T - a)
    # When n_k_total is odd, the last tile of half 1 is past the end of the
    # time axis (its DMA index is clamped in the index_map); skip it entirely.
    in_bounds = kk < n_k_total

    @pl.when(fully_valid)
    def _fast():
        # No masks: pure load -> square -> accumulate (HBM-bandwidth bound).
        acc1 = e1_acc[...]
        acc2 = e2_acc[...]
        for j in range(n_chunks):
            o = j * acc_w
            c1 = s1_ref[:, o:o + acc_w].astype(jnp.float32)
            c2 = s2_ref[:, o:o + acc_w].astype(jnp.float32)
            acc1 = acc1 + c1 * c1
            acc2 = acc2 + c2 * c2
        e1_acc[...] = acc1
        e2_acc[...] = acc2

    @pl.when(jnp.logical_and(jnp.logical_not(fully_valid), in_bounds))
    def _masked():
        # Boundary tiles only.  Bounds are shifted into tile/chunk-local
        # coordinates on narrow (TB, 1) data; the iota stays constant.
        tau = tau_ref[...]                                  # (TB, 1) int32
        lo1 = jnp.maximum(tau, 0) - t0
        hi1 = (T + jnp.minimum(tau, 0)) - t0
        lo2 = jnp.maximum(-tau, 0) - t0
        hi2 = (T - jnp.maximum(tau, 0)) - t0
        t = jax.lax.broadcasted_iota(jnp.int32, (TB, acc_w), 1)
        acc1 = e1_acc[...]
        acc2 = e2_acc[...]
        for j in range(n_chunks):
            o = j * acc_w
            c1 = s1_ref[:, o:o + acc_w].astype(jnp.float32)
            c2 = s2_ref[:, o:o + acc_w].astype(jnp.float32)
            m1 = (t >= lo1 - o) & (t < hi1 - o)
            m2 = (t >= lo2 - o) & (t < hi2 - o)
            acc1 = acc1 + jnp.where(m1, c1 * c1, 0.0)
            acc2 = acc2 + jnp.where(m2, c2 * c2, 0.0)
        e1_acc[...] = acc1
        e2_acc[...] = acc2

    @pl.when(k == n_k_half - 1)
    def _finalize():
        # Single cross-lane reduction per (batch tile, half).
        e1_out[0, :, :] = jnp.sum(e1_acc[...], axis=1, keepdims=True).astype(e1_out.dtype)
        e2_out[0, :, :] = jnp.sum(e2_acc[...], axis=1, keepdims=True).astype(e2_out.dtype)


def ild(s1: jax.Array, s2: jax.Array, tau_12: jax.Array) -> jax.Array:
    """s1, s2: [B, T]; tau_12: [B] int. Returns [B] float32 = E1 / E2."""
    B, T = s1.shape
    assert s2.shape == (B, T)

    LANE = 128
    TB = min(256, _round_up(max(B, 1), 8))

    # Time tile: large enough to amortize the ~0.35us/step pipeline overhead,
    # bounded by ~4 MiB per input tile (VMEM) and a cap on in-kernel unroll.
    bytes_per_tile = 4 * 1024 * 1024
    tt_budget = max(LANE, (bytes_per_tile // (4 * TB)) // LANE * LANE)
    TT = min(_round_up(T, LANE), tt_budget, 32768)

    # Accumulator lane width: largest multiple of 128 (<= 512) dividing TT, so
    # the per-step accumulation is pure aligned strided adds with no remainder.
    m = TT // LANE
    d = max(dd for dd in (4, 3, 2, 1) if m % dd == 0)
    ACC_W = LANE * d

    n_bt = pl.cdiv(B, TB)
    n_k_total = pl.cdiv(T, TT)
    # Split the time axis into two parallel halves so both TensorCores of a
    # dual-core chip get work even with a single batch tile (no-op on 1-TC chips).
    n_halves = 2 if n_k_total >= 2 else 1
    n_k_half = pl.cdiv(n_k_total, n_halves)

    tau_i32 = tau_12.astype(jnp.int32)
    tau2d = tau_i32.reshape(B, 1)

    # Per-batch-tile max|tau| (scalar-prefetched); padded rows contribute 0 so
    # they never disable the fast path.
    abs_tau = jnp.abs(tau_i32)
    pad = n_bt * TB - B
    if pad:
        abs_tau = jnp.pad(abs_tau, (0, pad))
    amax = jnp.max(abs_tau.reshape(n_bt, TB), axis=1).astype(jnp.int32)

    kernel = functools.partial(_ild_kernel, T=T, TT=TT, acc_w=ACC_W,
                               n_k_half=n_k_half, n_k_total=n_k_total)

    def sig_map(i, h, k, amax_ref):
        # Clamp so the (possibly) out-of-range last tile of half 1 never DMAs
        # past the array; the kernel skips its contribution anyway.
        return (i, jnp.minimum(h * n_k_half + k, n_k_total - 1))

    e1_part, e2_part = pl.pallas_call(
        kernel,
        out_shape=(
            jax.ShapeDtypeStruct((n_halves, B, 1), jnp.float32),
            jax.ShapeDtypeStruct((n_halves, B, 1), jnp.float32),
        ),
        grid_spec=pltpu.PrefetchScalarGridSpec(
            num_scalar_prefetch=1,
            grid=(n_bt, n_halves, n_k_half),
            in_specs=[
                pl.BlockSpec((TB, 1), lambda i, h, k, a: (i, 0)),   # tau (per-row)
                pl.BlockSpec((TB, TT), sig_map),                    # s1 tile
                pl.BlockSpec((TB, TT), sig_map),                    # s2 tile
            ],
            out_specs=(
                pl.BlockSpec((1, TB, 1), lambda i, h, k, a: (h, i, 0)),
                pl.BlockSpec((1, TB, 1), lambda i, h, k, a: (h, i, 0)),
            ),
            scratch_shapes=[
                pltpu.VMEM((TB, ACC_W), jnp.float32),   # E1 accumulator
                pltpu.VMEM((TB, ACC_W), jnp.float32),   # E2 accumulator
            ],
        ),
        compiler_params=pltpu.CompilerParams(
            dimension_semantics=("parallel", "parallel", "arbitrary"),
            vmem_limit_bytes=32 * 1024 * 1024,
        ),
    )(amax, tau2d, s1, s2)

    # Tiny halves-combine + true divide (bit-parity with the reference division).
    e1 = jnp.sum(e1_part[:, :, 0], axis=0)
    e2 = jnp.sum(e2_part[:, :, 0], axis=0)
    return e1 / e2


def _ild_reference(s1, s2, tau_12):
    """Plain-JAX reference implementing the same truncating-shift semantics."""
    B, T = s1.shape
    t = jnp.arange(T)[None, :]
    tau = tau_12[:, None]
    m1 = (t >= jnp.maximum(tau, 0)) & (t < T + jnp.minimum(tau, 0))
    m2 = (t >= jnp.maximum(-tau, 0)) & (t < T - jnp.maximum(tau, 0))
    e1 = jnp.sum(jnp.where(m1, s1 * s1, 0.0), axis=1)
    e2 = jnp.sum(jnp.where(m2, s2 * s2, 0.0), axis=1)
    return e1 / e2


if __name__ == "__main__":
    key = jax.random.PRNGKey(0)

    def run_case(case_key, B, T, max_tau):
        k1, k2, k3 = jax.random.split(case_key, 3)
        s1 = jax.random.normal(k1, (B, T), dtype=jnp.float32)
        s2 = 0.5 * jax.random.normal(k2, (B, T), dtype=jnp.float32) + 0.1
        tau = jax.random.randint(k3, (B,), -max_tau, max_tau + 1, dtype=jnp.int32)
        out = ild(s1, s2, tau)
        jax.block_until_ready(out)
        ref = _ild_reference(s1, s2, tau)
        assert jnp.allclose(out, ref, rtol=1e-4, atol=1e-5), (B, T, out, ref)

    keys = jax.random.split(key, 3)
    # Small single-tile case (masked path only).
    run_case(keys[0], B=8, T=4096, max_tau=128)
    # Multi-tile case: exercises the no-mask fast path, the two parallel time
    # halves, the partial last time tile and the clamped out-of-range tile.
    run_case(keys[1], B=8, T=66000, max_tau=200)
    # Ragged case: B not a multiple of 8, T not a multiple of 128.
    run_case(keys[2], B=5, T=1000, max_tau=37)

    print("KERNEL_OK")
</pallas_src>

<mosaic_0001>
module attributes {stable_mosaic.version = 11 : i64} {
  func.func @_ild_kernel(%arg0: i32, %arg1: i32, %arg2: i32, %arg3: memref<1xi32, #tpu.memory_space<smem>>, %arg4: memref<8x1xi32, #tpu.memory_space<vmem>>, %arg5: memref<8x4096xf32, #tpu.memory_space<vmem>>, %arg6: memref<8x4096xf32, #tpu.memory_space<vmem>>, %arg7: memref<1x8x1xf32, #tpu.memory_space<vmem>>, %arg8: memref<1x8x1xf32, #tpu.memory_space<vmem>>, %arg9: memref<8x512xf32, #tpu.memory_space<vmem>>, %arg10: memref<8x512xf32, #tpu.memory_space<vmem>>) attributes {dimension_semantics = [#tpu.dimension_semantics<parallel>, #tpu.dimension_semantics<parallel>, #tpu.dimension_semantics<arbitrary>], iteration_bounds = array<i64: 1, 1, 1>, scalar_prefetch = 1 : i64, scratch_operands = 2 : i64, tpu.core_type = #tpu.core_type<tc>, window_params = [{transform_indices = @transform_0, window_bounds = array<i64: 8, 1>}, {transform_indices = @transform_1, window_bounds = array<i64: 8, 4096>}, {transform_indices = @transform_2, window_bounds = array<i64: 8, 4096>}, {transform_indices = @transform_3, window_bounds = array<i64: 1, 8, 1>}, {transform_indices = @transform_4, window_bounds = array<i64: 1, 8, 1>}]} {
    %c1_i32 = arith.constant 1 : i32
    %0 = arith.muli %arg1, %c1_i32 : i32
    %1 = arith.addi %0, %arg2 : i32
    %c4096_i32 = arith.constant 4096 : i32
    %2 = arith.muli %1, %c4096_i32 : i32
    %c0_i32 = arith.constant 0 : i32
    %3 = arith.cmpi eq, %arg2, %c0_i32 : i32
    %4 = arith.extui %3 : i1 to i32
    %c0_i32_0 = arith.constant 0 : i32
    %5 = arith.cmpi ne, %4, %c0_i32_0 : i32
    scf.if %5 {
      %cst = arith.constant 0.000000e+00 : f32
      %23 = vector.broadcast %cst : f32 to vector<8x512xf32>
      %c0 = arith.constant 0 : index
      %c0_8 = arith.constant 0 : index
      %24 = vector.load %arg9[%c0, %c0_8] : memref<8x512xf32, #tpu.memory_space<vmem>>, vector<8x512xf32>
      tpu.vector_store %arg9[%c0, %c0_8], %23 {strides = array<i32>} : memref<8x512xf32, #tpu.memory_space<vmem>>, vector<8x512xf32>,
      %cst_9 = arith.constant 0.000000e+00 : f32
      %25 = vector.broadcast %cst_9 : f32 to vector<8x512xf32>
      %c0_10 = arith.constant 0 : index
      %c0_11 = arith.constant 0 : index
      %26 = vector.load %arg10[%c0_10, %c0_11] : memref<8x512xf32, #tpu.memory_space<vmem>>, vector<8x512xf32>
      tpu.vector_store %arg10[%c0_10, %c0_11], %25 {strides = array<i32>} : memref<8x512xf32, #tpu.memory_space<vmem>>, vector<8x512xf32>,
    } else {
    }
    %6 = arith.index_cast %arg0 : i32 to index
    %7 = memref.load %arg3[%6] : memref<1xi32, #tpu.memory_space<smem>>
    %8 = arith.cmpi sge, %2, %7 : i32
    %c4096_i32_1 = arith.constant 4096 : i32
    %9 = arith.addi %2, %c4096_i32_1 : i32
    %c4096_i32_2 = arith.constant 4096 : i32
    %10 = arith.subi %c4096_i32_2, %7 : i32
    %11 = arith.cmpi sle, %9, %10 : i32
    %12 = arith.andi %8, %11 : i1
    %c1_i32_3 = arith.constant 1 : i32
    %13 = arith.cmpi slt, %1, %c1_i32_3 : i32
    %14 = arith.extui %12 : i1 to i32
    %c0_i32_4 = arith.constant 0 : i32
    %15 = arith.cmpi ne, %14, %c0_i32_4 : i32
    scf.if %15 {
      %c0 = arith.constant 0 : index
      %c0_8 = arith.constant 0 : index
      %23 = vector.load %arg9[%c0, %c0_8] : memref<8x512xf32, #tpu.memory_space<vmem>>, vector<8x512xf32>
      %c0_9 = arith.constant 0 : index
      %c0_10 = arith.constant 0 : index
      %24 = vector.load %arg10[%c0_9, %c0_10] : memref<8x512xf32, #tpu.memory_space<vmem>>, vector<8x512xf32>
      %c0_11 = arith.constant 0 : index
      %c0_12 = arith.constant 0 : index
      %25 = vector.load %arg5[%c0_11, %c0_12] : memref<8x4096xf32, #tpu.memory_space<vmem>>, vector<8x512xf32>
      %c0_13 = arith.constant 0 : index
      %c0_14 = arith.constant 0 : index
      %26 = vector.load %arg6[%c0_13, %c0_14] : memref<8x4096xf32, #tpu.memory_space<vmem>>, vector<8x512xf32>
      %27 = arith.mulf %25, %25 : vector<8x512xf32>
      %28 = arith.addf %23, %27 : vector<8x512xf32>
      %29 = arith.mulf %26, %26 : vector<8x512xf32>
      %30 = arith.addf %24, %29 : vector<8x512xf32>
      %c0_15 = arith.constant 0 : index
      %c512 = arith.constant 512 : index
      %31 = vector.load %arg5[%c0_15, %c512] : memref<8x4096xf32, #tpu.memory_space<vmem>>, vector<8x512xf32>
      %c0_16 = arith.constant 0 : index
      %c512_17 = arith.constant 512 : index
      %32 = vector.load %arg6[%c0_16, %c512_17] : memref<8x4096xf32, #tpu.memory_space<vmem>>, vector<8x512xf32>
      %33 = arith.mulf %31, %31 : vector<8x512xf32>
      %34 = arith.addf %28, %33 : vector<8x512xf32>
      %35 = arith.mulf %32, %32 : vector<8x512xf32>
      %36 = arith.addf %30, %35 : vector<8x512xf32>
      %c0_18 = arith.constant 0 : index
      %c1024 = arith.constant 1024 : index
      %37 = vector.load %arg5[%c0_18, %c1024] : memref<8x4096xf32, #tpu.memory_space<vmem>>, vector<8x512xf32>
      %c0_19 = arith.constant 0 : index
      %c1024_20 = arith.constant 1024 : index
      %38 = vector.load %arg6[%c0_19, %c1024_20] : memref<8x4096xf32, #tpu.memory_space<vmem>>, vector<8x512xf32>
      %39 = arith.mulf %37, %37 : vector<8x512xf32>
      %40 = arith.addf %34, %39 : vector<8x512xf32>
      %41 = arith.mulf %38, %38 : vector<8x512xf32>
      %42 = arith.addf %36, %41 : vector<8x512xf32>
      %c0_21 = arith.constant 0 : index
      %c1536 = arith.constant 1536 : index
      %43 = vector.load %arg5[%c0_21, %c1536] : memref<8x4096xf32, #tpu.memory_space<vmem>>, vector<8x512xf32>
      %c0_22 = arith.constant 0 : index
      %c1536_23 = arith.constant 1536 : index
      %44 = vector.load %arg6[%c0_22, %c1536_23] : memref<8x4096xf32, #tpu.memory_space<vmem>>, vector<8x512xf32>
      %45 = arith.mulf %43, %43 : vector<8x512xf32>
      %46 = arith.addf %40, %45 : vector<8x512xf32>
      %47 = arith.mulf %44, %44 : vector<8x512xf32>
      %48 = arith.addf %42, %47 : vector<8x512xf32>
      %c0_24 = arith.constant 0 : index
      %c2048 = arith.constant 2048 : index
      %49 = vector.load %arg5[%c0_24, %c2048] : memref<8x4096xf32, #tpu.memory_space<vmem>>, vector<8x512xf32>
      %c0_25 = arith.constant 0 : index
      %c2048_26 = arith.constant 2048 : index
      %50 = vector.load %arg6[%c0_25, %c2048_26] : memref<8x4096xf32, #tpu.memory_space<vmem>>, vector<8x512xf32>
      %51 = arith.mulf %49, %49 : vector<8x512xf32>
      %52 = arith.addf %46, %51 : vector<8x512xf32>
      %53 = arith.mulf %50, %50 : vector<8x512xf32>
      %54 = arith.addf %48, %53 : vector<8x512xf32>
      %c0_27 = arith.constant 0 : index
      %c2560 = arith.constant 2560 : index
      %55 = vector.load %arg5[%c0_27, %c2560] : memref<8x4096xf32, #tpu.memory_space<vmem>>, vector<8x512xf32>
      %c0_28 = arith.constant 0 : index
      %c2560_29 = arith.constant 2560 : index
      %56 = vector.load %arg6[%c0_28, %c2560_29] : memref<8x4096xf32, #tpu.memory_space<vmem>>, vector<8x512xf32>
      %57 = arith.mulf %55, %55 : vector<8x512xf32>
      %58 = arith.addf %52, %57 : vector<8x512xf32>
      %59 = arith.mulf %56, %56 : vector<8x512xf32>
      %60 = arith.addf %54, %59 : vector<8x512xf32>
      %c0_30 = arith.constant 0 : index
      %c3072 = arith.constant 3072 : index
      %61 = vector.load %arg5[%c0_30, %c3072] : memref<8x4096xf32, #tpu.memory_space<vmem>>, vector<8x512xf32>
      %c0_31 = arith.constant 0 : index
      %c3072_32 = arith.constant 3072 : index
      %62 = vector.load %arg6[%c0_31, %c3072_32] : memref<8x4096xf32, #tpu.memory_space<vmem>>, vector<8x512xf32>
      %63 = arith.mulf %61, %61 : vector<8x512xf32>
      %64 = arith.addf %58, %63 : vector<8x512xf32>
      %65 = arith.mulf %62, %62 : vector<8x512xf32>
      %66 = arith.addf %60, %65 : vector<8x512xf32>
      %c0_33 = arith.constant 0 : index
      %c3584 = arith.constant 3584 : index
      %67 = vector.load %arg5[%c0_33, %c3584] : memref<8x4096xf32, #tpu.memory_space<vmem>>, vector<8x512xf32>
      %c0_34 = arith.constant 0 : index
      %c3584_35 = arith.constant 3584 : index
      %68 = vector.load %arg6[%c0_34, %c3584_35] : memref<8x4096xf32, #tpu.memory_space<vmem>>, vector<8x512xf32>
      %69 = arith.mulf %67, %67 : vector<8x512xf32>
      %70 = arith.addf %64, %69 : vector<8x512xf32>
      %71 = arith.mulf %68, %68 : vector<8x512xf32>
      %72 = arith.addf %66, %71 : vector<8x512xf32>
      %c0_36 = arith.constant 0 : index
      %c0_37 = arith.constant 0 : index
      %73 = vector.load %arg9[%c0_36, %c0_37] : memref<8x512xf32, #tpu.memory_space<vmem>>, vector<8x512xf32>
      tpu.vector_store %arg9[%c0_36, %c0_37], %70 {strides = array<i32>} : memref<8x512xf32, #tpu.memory_space<vmem>>, vector<8x512xf32>,
      %c0_38 = arith.constant 0 : index
      %c0_39 = arith.constant 0 : index
      %74 = vector.load %arg10[%c0_38, %c0_39] : memref<8x512xf32, #tpu.memory_space<vmem>>, vector<8x512xf32>
      tpu.vector_store %arg10[%c0_38, %c0_39], %72 {strides = array<i32>} : memref<8x512xf32, #tpu.memory_space<vmem>>, vector<8x512xf32>,
    } else {
    }
    %true = arith.constant true
    %16 = arith.xori %12, %true : i1
    %17 = arith.andi %16, %13 : i1
    %18 = arith.extui %17 : i1 to i32
    %c0_i32_5 = arith.constant 0 : i32
    %19 = arith.cmpi ne, %18, %c0_i32_5 : i32
    scf.if %19 {
      %c0 = arith.constant 0 : index
      %c0_8 = arith.constant 0 : index
      %23 = vector.load %arg4[%c0, %c0_8] : memref<8x1xi32, #tpu.memory_space<vmem>>, vector<8x1xi32>
      %c0_i32_9 = arith.constant 0 : i32
      %24 = vector.broadcast %c0_i32_9 : i32 to vector<8x1xi32>
      %25 = arith.maxsi %23, %24 : vector<8x1xi32>
      %26 = vector.broadcast %2 : i32 to vector<8x1xi32>
      %27 = arith.subi %25, %26 : vector<8x1xi32>
      %c0_i32_10 = arith.constant 0 : i32
      %28 = vector.broadcast %c0_i32_10 : i32 to vector<8x1xi32>
      %29 = arith.minsi %23, %28 : vector<8x1xi32>
      %c4096_i32_11 = arith.constant 4096 : i32
      %30 = vector.broadcast %c4096_i32_11 : i32 to vector<8x1xi32>
      %31 = arith.addi %30, %29 : vector<8x1xi32>
      %32 = vector.broadcast %2 : i32 to vector<8x1xi32>
      %33 = arith.subi %31, %32 : vector<8x1xi32>
      %c0_i32_12 = arith.constant 0 : i32
      %34 = vector.broadcast %c0_i32_12 : i32 to vector<8x1xi32>
      %35 = arith.subi %34, %23 : vector<8x1xi32>
      %c0_i32_13 = arith.constant 0 : i32
      %36 = vector.broadcast %c0_i32_13 : i32 to vector<8x1xi32>
      %37 = arith.maxsi %35, %36 : vector<8x1xi32>
      %38 = vector.broadcast %2 : i32 to vector<8x1xi32>
      %39 = arith.subi %37, %38 : vector<8x1xi32>
      %c0_i32_14 = arith.constant 0 : i32
      %40 = vector.broadcast %c0_i32_14 : i32 to vector<8x1xi32>
      %41 = arith.maxsi %23, %40 : vector<8x1xi32>
      %c4096_i32_15 = arith.constant 4096 : i32
      %42 = vector.broadcast %c4096_i32_15 : i32 to vector<8x1xi32>
      %43 = arith.subi %42, %41 : vector<8x1xi32>
      %44 = vector.broadcast %2 : i32 to vector<8x1xi32>
      %45 = arith.subi %43, %44 : vector<8x1xi32>
      %46 = tpu.iota {dimensions = array<i32: 1>} : vector<8x512xi32>
      %c0_16 = arith.constant 0 : index
      %c0_17 = arith.constant 0 : index
      %47 = vector.load %arg9[%c0_16, %c0_17] : memref<8x512xf32, #tpu.memory_space<vmem>>, vector<8x512xf32>
      %c0_18 = arith.constant 0 : index
      %c0_19 = arith.constant 0 : index
      %48 = vector.load %arg10[%c0_18, %c0_19] : memref<8x512xf32, #tpu.memory_space<vmem>>, vector<8x512xf32>
      %c0_20 = arith.constant 0 : index
      %c0_21 = arith.constant 0 : index
      %49 = vector.load %arg5[%c0_20, %c0_21] : memref<8x4096xf32, #tpu.memory_space<vmem>>, vector<8x512xf32>
      %c0_22 = arith.constant 0 : index
      %c0_23 = arith.constant 0 : index
      %50 = vector.load %arg6[%c0_22, %c0_23] : memref<8x4096xf32, #tpu.memory_space<vmem>>, vector<8x512xf32>
      %c0_i32_24 = arith.constant 0 : i32
      %51 = vector.broadcast %c0_i32_24 : i32 to vector<8x1xi32>
      %52 = arith.subi %27, %51 : vector<8x1xi32>
      %53 = vector.broadcast %52 : vector<8x1xi32> to vector<8x512xi32>
      %54 = arith.cmpi sge, %46, %53 : vector<8x512xi32>
      %c0_i32_25 = arith.constant 0 : i32
      %55 = vector.broadcast %c0_i32_25 : i32 to vector<8x1xi32>
      %56 = arith.subi %33, %55 : vector<8x1xi32>
      %57 = vector.broadcast %56 : vector<8x1xi32> to vector<8x512xi32>
      %58 = arith.cmpi slt, %46, %57 : vector<8x512xi32>
      %59 = arith.andi %54, %58 : vector<8x512xi1>
      %c0_i32_26 = arith.constant 0 : i32
      %60 = vector.broadcast %c0_i32_26 : i32 to vector<8x1xi32>
      %61 = arith.subi %39, %60 : vector<8x1xi32>
      %62 = vector.broadcast %61 : vector<8x1xi32> to vector<8x512xi32>
      %63 = arith.cmpi sge, %46, %62 : vector<8x512xi32>
      %c0_i32_27 = arith.constant 0 : i32
      %64 = vector.broadcast %c0_i32_27 : i32 to vector<8x1xi32>
      %65 = arith.subi %45, %64 : vector<8x1xi32>
      %66 = vector.broadcast %65 : vector<8x1xi32> to vector<8x512xi32>
      %67 = arith.cmpi slt, %46, %66 : vector<8x512xi32>
      %68 = arith.andi %63, %67 : vector<8x512xi1>
      %69 = arith.mulf %49, %49 : vector<8x512xf32>
      %cst = arith.constant 0.000000e+00 : f32
      %70 = vector.broadcast %cst : f32 to vector<8x512xf32>
      %71 = arith.select %59, %69, %70 : vector<8x512xi1>, vector<8x512xf32>
      %72 = arith.addf %47, %71 : vector<8x512xf32>
      %73 = arith.mulf %50, %50 : vector<8x512xf32>
      %cst_28 = arith.constant 0.000000e+00 : f32
      %74 = vector.broadcast %cst_28 : f32 to vector<8x512xf32>
      %75 = arith.select %68, %73, %74 : vector<8x512xi1>, vector<8x512xf32>
      %76 = arith.addf %48, %75 : vector<8x512xf32>
      %c0_29 = arith.constant 0 : index
      %c512 = arith.constant 512 : index
      %77 = vector.load %arg5[%c0_29, %c512] : memref<8x4096xf32, #tpu.memory_space<vmem>>, vector<8x512xf32>
      %c0_30 = arith.constant 0 : index
      %c512_31 = arith.constant 512 : index
      %78 = vector.load %arg6[%c0_30, %c512_31] : memref<8x4096xf32, #tpu.memory_space<vmem>>, vector<8x512xf32>
      %c512_i32 = arith.constant 512 : i32
      %79 = vector.broadcast %c512_i32 : i32 to vector<8x1xi32>
      %80 = arith.subi %27, %79 : vector<8x1xi32>
      %81 = vector.broadcast %80 : vector<8x1xi32> to vector<8x512xi32>
      %82 = arith.cmpi sge, %46, %81 : vector<8x512xi32>
      %c512_i32_32 = arith.constant 512 : i32
      %83 = vector.broadcast %c512_i32_32 : i32 to vector<8x1xi32>
      %84 = arith.subi %33, %83 : vector<8x1xi32>
      %85 = vector.broadcast %84 : vector<8x1xi32> to vector<8x512xi32>
      %86 = arith.cmpi slt, %46, %85 : vector<8x512xi32>
      %87 = arith.andi %82, %86 : vector<8x512xi1>
      %c512_i32_33 = arith.constant 512 : i32
      %88 = vector.broadcast %c512_i32_33 : i32 to vector<8x1xi32>
      %89 = arith.subi %39, %88 : vector<8x1xi32>
      %90 = vector.broadcast %89 : vector<8x1xi32> to vector<8x512xi32>
      %91 = arith.cmpi sge, %46, %90 : vector<8x512xi32>
      %c512_i32_34 = arith.constant 512 : i32
      %92 = vector.broadcast %c512_i32_34 : i32 to vector<8x1xi32>
      %93 = arith.subi %45, %92 : vector<8x1xi32>
      %94 = vector.broadcast %93 : vector<8x1xi32> to vector<8x512xi32>
      %95 = arith.cmpi slt, %46, %94 : vector<8x512xi32>
      %96 = arith.andi %91, %95 : vector<8x512xi1>
      %97 = arith.mulf %77, %77 : vector<8x512xf32>
      %cst_35 = arith.constant 0.000000e+00 : f32
      %98 = vector.broadcast %cst_35 : f32 to vector<8x512xf32>
      %99 = arith.select %87, %97, %98 : vector<8x512xi1>, vector<8x512xf32>
      %100 = arith.addf %72, %99 : vector<8x512xf32>
      %101 = arith.mulf %78, %78 : vector<8x512xf32>
      %cst_36 = arith.constant 0.000000e+00 : f32
      %102 = vector.broadcast %cst_36 : f32 to vector<8x512xf32>
      %103 = arith.select %96, %101, %102 : vector<8x512xi1>, vector<8x512xf32>
      %104 = arith.addf %76, %103 : vector<8x512xf32>
      %c0_37 = arith.constant 0 : index
      %c1024 = arith.constant 1024 : index
      %105 = vector.load %arg5[%c0_37, %c1024] : memref<8x4096xf32, #tpu.memory_space<vmem>>, vector<8x512xf32>
      %c0_38 = arith.constant 0 : index
      %c1024_39 = arith.constant 1024 : index
      %106 = vector.load %arg6[%c0_38, %c1024_39] : memref<8x4096xf32, #tpu.memory_space<vmem>>, vector<8x512xf32>
      %c1024_i32 = arith.constant 1024 : i32
      %107 = vector.broadcast %c1024_i32 : i32 to vector<8x1xi32>
      %108 = arith.subi %27, %107 : vector<8x1xi32>
      %109 = vector.broadcast %108 : vector<8x1xi32> to vector<8x512xi32>
      %110 = arith.cmpi sge, %46, %109 : vector<8x512xi32>
      %c1024_i32_40 = arith.constant 1024 : i32
      %111 = vector.broadcast %c1024_i32_40 : i32 to vector<8x1xi32>
      %112 = arith.subi %33, %111 : vector<8x1xi32>
      %113 = vector.broadcast %112 : vector<8x1xi32> to vector<8x512xi32>
      %114 = arith.cmpi slt, %46, %113 : vector<8x512xi32>
      %115 = arith.andi %110, %114 : vector<8x512xi1>
      %c1024_i32_41 = arith.constant 1024 : i32
      %116 = vector.broadcast %c1024_i32_41 : i32 to vector<8x1xi32>
      %117 = arith.subi %39, %116 : vector<8x1xi32>
      %118 = vector.broadcast %117 : vector<8x1xi32> to vector<8x512xi32>
      %119 = arith.cmpi sge, %46, %118 : vector<8x512xi32>
      %c1024_i32_42 = arith.constant 1024 : i32
      %120 = vector.broadcast %c1024_i32_42 : i32 to vector<8x1xi32>
      %121 = arith.subi %45, %120 : vector<8x1xi32>
      %122 = vector.broadcast %121 : vector<8x1xi32> to vector<8x512xi32>
      %123 = arith.cmpi slt, %46, %122 : vector<8x512xi32>
      %124 = arith.andi %119, %123 : vector<8x512xi1>
      %125 = arith.mulf %105, %105 : vector<8x512xf32>
      %cst_43 = arith.constant 0.000000e+00 : f32
      %126 = vector.broadcast %cst_43 : f32 to vector<8x512xf32>
      %127 = arith.select %115, %125, %126 : vector<8x512xi1>, vector<8x512xf32>
      %128 = arith.addf %100, %127 : vector<8x512xf32>
      %129 = arith.mulf %106, %106 : vector<8x512xf32>
      %cst_44 = arith.constant 0.000000e+00 : f32
      %130 = vector.broadcast %cst_44 : f32 to vector<8x512xf32>
      %131 = arith.select %124, %129, %130 : vector<8x512xi1>, vector<8x512xf32>
      %132 = arith.addf %104, %131 : vector<8x512xf32>
      %c0_45 = arith.constant 0 : index
      %c1536 = arith.constant 1536 : index
      %133 = vector.load %arg5[%c0_45, %c1536] : memref<8x4096xf32, #tpu.memory_space<vmem>>, vector<8x512xf32>
      %c0_46 = arith.constant 0 : index
      %c1536_47 = arith.constant 1536 : index
      %134 = vector.load %arg6[%c0_46, %c1536_47] : memref<8x4096xf32, #tpu.memory_space<vmem>>, vector<8x512xf32>
      %c1536_i32 = arith.constant 1536 : i32
      %135 = vector.broadcast %c1536_i32 : i32 to vector<8x1xi32>
      %136 = arith.subi %27, %135 : vector<8x1xi32>
      %137 = vector.broadcast %136 : vector<8x1xi32> to vector<8x512xi32>
      %138 = arith.cmpi sge, %46, %137 : vector<8x512xi32>
      %c1536_i32_48 = arith.constant 1536 : i32
      %139 = vector.broadcast %c1536_i32_48 : i32 to vector<8x1xi32>
      %140 = arith.subi %33, %139 : vector<8x1xi32>
      %141 = vector.broadcast %140 : vector<8x1xi32> to vector<8x512xi32>
      %142 = arith.cmpi slt, %46, %141 : vector<8x512xi32>
      %143 = arith.andi %138, %142 : vector<8x512xi1>
      %c1536_i32_49 = arith.constant 1536 : i32
      %144 = vector.broadcast %c1536_i32_49 : i32 to vector<8x1xi32>
      %145 = arith.subi %39, %144 : vector<8x1xi32>
      %146 = vector.broadcast %145 : vector<8x1xi32> to vector<8x512xi32>
      %147 = arith.cmpi sge, %46, %146 : vector<8x512xi32>
      %c1536_i32_50 = arith.constant 1536 : i32
      %148 = vector.broadcast %c1536_i32_50 : i32 to vector<8x1xi32>
      %149 = arith.subi %45, %148 : vector<8x1xi32>
      %150 = vector.broadcast %149 : vector<8x1xi32> to vector<8x512xi32>
      %151 = arith.cmpi slt, %46, %150 : vector<8x512xi32>
      %152 = arith.andi %147, %151 : vector<8x512xi1>
      %153 = arith.mulf %133, %133 : vector<8x512xf32>
      %cst_51 = arith.constant 0.000000e+00 : f32
      %154 = vector.broadcast %cst_51 : f32 to vector<8x512xf32>
      %155 = arith.select %143, %153, %154 : vector<8x512xi1>, vector<8x512xf32>
      %156 = arith.addf %128, %155 : vector<8x512xf32>
      %157 = arith.mulf %134, %134 : vector<8x512xf32>
      %cst_52 = arith.constant 0.000000e+00 : f32
      %158 = vector.broadcast %cst_52 : f32 to vector<8x512xf32>
      %159 = arith.select %152, %157, %158 : vector<8x512xi1>, vector<8x512xf32>
      %160 = arith.addf %132, %159 : vector<8x512xf32>
      %c0_53 = arith.constant 0 : index
      %c2048 = arith.constant 2048 : index
      %161 = vector.load %arg5[%c0_53, %c2048] : memref<8x4096xf32, #tpu.memory_space<vmem>>, vector<8x512xf32>
      %c0_54 = arith.constant 0 : index
      %c2048_55 = arith.constant 2048 : index
      %162 = vector.load %arg6[%c0_54, %c2048_55] : memref<8x4096xf32, #tpu.memory_space<vmem>>, vector<8x512xf32>
      %c2048_i32 = arith.constant 2048 : i32
      %163 = vector.broadcast %c2048_i32 : i32 to vector<8x1xi32>
      %164 = arith.subi %27, %163 : vector<8x1xi32>
      %165 = vector.broadcast %164 : vector<8x1xi32> to vector<8x512xi32>
      %166 = arith.cmpi sge, %46, %165 : vector<8x512xi32>
      %c2048_i32_56 = arith.constant 2048 : i32
      %167 = vector.broadcast %c2048_i32_56 : i32 to vector<8x1xi32>
      %168 = arith.subi %33, %167 : vector<8x1xi32>
      %169 = vector.broadcast %168 : vector<8x1xi32> to vector<8x512xi32>
      %170 = arith.cmpi slt, %46, %169 : vector<8x512xi32>
      %171 = arith.andi %166, %170 : vector<8x512xi1>
      %c2048_i32_57 = arith.constant 2048 : i32
      %172 = vector.broadcast %c2048_i32_57 : i32 to vector<8x1xi32>
      %173 = arith.subi %39, %172 : vector<8x1xi32>
      %174 = vector.broadcast %173 : vector<8x1xi32> to vector<8x512xi32>
      %175 = arith.cmpi sge, %46, %174 : vector<8x512xi32>
      %c2048_i32_58 = arith.constant 2048 : i32
      %176 = vector.broadcast %c2048_i32_58 : i32 to vector<8x1xi32>
      %177 = arith.subi %45, %176 : vector<8x1xi32>
      %178 = vector.broadcast %177 : vector<8x1xi32> to vector<8x512xi32>
      %179 = arith.cmpi slt, %46, %178 : vector<8x512xi32>
      %180 = arith.andi %175, %179 : vector<8x512xi1>
      %181 = arith.mulf %161, %161 : vector<8x512xf32>
      %cst_59 = arith.constant 0.000000e+00 : f32
      %182 = vector.broadcast %cst_59 : f32 to vector<8x512xf32>
      %183 = arith.select %171, %181, %182 : vector<8x512xi1>, vector<8x512xf32>
      %184 = arith.addf %156, %183 : vector<8x512xf32>
      %185 = arith.mulf %162, %162 : vector<8x512xf32>
      %cst_60 = arith.constant 0.000000e+00 : f32
      %186 = vector.broadcast %cst_60 : f32 to vector<8x512xf32>
      %187 = arith.select %180, %185, %186 : vector<8x512xi1>, vector<8x512xf32>
      %188 = arith.addf %160, %187 : vector<8x512xf32>
      %c0_61 = arith.constant 0 : index
      %c2560 = arith.constant 2560 : index
      %189 = vector.load %arg5[%c0_61, %c2560] : memref<8x4096xf32, #tpu.memory_space<vmem>>, vector<8x512xf32>
      %c0_62 = arith.constant 0 : index
      %c2560_63 = arith.constant 2560 : index
      %190 = vector.load %arg6[%c0_62, %c2560_63] : memref<8x4096xf32, #tpu.memory_space<vmem>>, vector<8x512xf32>
      %c2560_i32 = arith.constant 2560 : i32
      %191 = vector.broadcast %c2560_i32 : i32 to vector<8x1xi32>
      %192 = arith.subi %27, %191 : vector<8x1xi32>
      %193 = vector.broadcast %192 : vector<8x1xi32> to vector<8x512xi32>
      %194 = arith.cmpi sge, %46, %193 : vector<8x512xi32>
      %c2560_i32_64 = arith.constant 2560 : i32
      %195 = vector.broadcast %c2560_i32_64 : i32 to vector<8x1xi32>
      %196 = arith.subi %33, %195 : vector<8x1xi32>
      %197 = vector.broadcast %196 : vector<8x1xi32> to vector<8x512xi32>
      %198 = arith.cmpi slt, %46, %197 : vector<8x512xi32>
      %199 = arith.andi %194, %198 : vector<8x512xi1>
      %c2560_i32_65 = arith.constant 2560 : i32
      %200 = vector.broadcast %c2560_i32_65 : i32 to vector<8x1xi32>
      %201 = arith.subi %39, %200 : vector<8x1xi32>
      %202 = vector.broadcast %201 : vector<8x1xi32> to vector<8x512xi32>
      %203 = arith.cmpi sge, %46, %202 : vector<8x512xi32>
      %c2560_i32_66 = arith.constant 2560 : i32
      %204 = vector.broadcast %c2560_i32_66 : i32 to vector<8x1xi32>
      %205 = arith.subi %45, %204 : vector<8x1xi32>
      %206 = vector.broadcast %205 : vector<8x1xi32> to vector<8x512xi32>
      %207 = arith.cmpi slt, %46, %206 : vector<8x512xi32>
      %208 = arith.andi %203, %207 : vector<8x512xi1>
      %209 = arith.mulf %189, %189 : vector<8x512xf32>
      %cst_67 = arith.constant 0.000000e+00 : f32
      %210 = vector.broadcast %cst_67 : f32 to vector<8x512xf32>
      %211 = arith.select %199, %209, %210 : vector<8x512xi1>, vector<8x512xf32>
      %212 = arith.addf %184, %211 : vector<8x512xf32>
      %213 = arith.mulf %190, %190 : vector<8x512xf32>
      %cst_68 = arith.constant 0.000000e+00 : f32
      %214 = vector.broadcast %cst_68 : f32 to vector<8x512xf32>
      %215 = arith.select %208, %213, %214 : vector<8x512xi1>, vector<8x512xf32>
      %216 = arith.addf %188, %215 : vector<8x512xf32>
      %c0_69 = arith.constant 0 : index
      %c3072 = arith.constant 3072 : index
      %217 = vector.load %arg5[%c0_69, %c3072] : memref<8x4096xf32, #tpu.memory_space<vmem>>, vector<8x512xf32>
      %c0_70 = arith.constant 0 : index
      %c3072_71 = arith.constant 3072 : index
      %218 = vector.load %arg6[%c0_70, %c3072_71] : memref<8x4096xf32, #tpu.memory_space<vmem>>, vector<8x512xf32>
      %c3072_i32 = arith.constant 3072 : i32
      %219 = vector.broadcast %c3072_i32 : i32 to vector<8x1xi32>
      %220 = arith.subi %27, %219 : vector<8x1xi32>
      %221 = vector.broadcast %220 : vector<8x1xi32> to vector<8x512xi32>
      %222 = arith.cmpi sge, %46, %221 : vector<8x512xi32>
      %c3072_i32_72 = arith.constant 3072 : i32
      %223 = vector.broadcast %c3072_i32_72 : i32 to vector<8x1xi32>
      %224 = arith.subi %33, %223 : vector<8x1xi32>
      %225 = vector.broadcast %224 : vector<8x1xi32> to vector<8x512xi32>
      %226 = arith.cmpi slt, %46, %225 : vector<8x512xi32>
      %227 = arith.andi %222, %226 : vector<8x512xi1>
      %c3072_i32_73 = arith.constant 3072 : i32
      %228 = vector.broadcast %c3072_i32_73 : i32 to vector<8x1xi32>
      %229 = arith.subi %39, %228 : vector<8x1xi32>
      %230 = vector.broadcast %229 : vector<8x1xi32> to vector<8x512xi32>
      %231 = arith.cmpi sge, %46, %230 : vector<8x512xi32>
      %c3072_i32_74 = arith.constant 3072 : i32
      %232 = vector.broadcast %c3072_i32_74 : i32 to vector<8x1xi32>
      %233 = arith.subi %45, %232 : vector<8x1xi32>
      %234 = vector.broadcast %233 : vector<8x1xi32> to vector<8x512xi32>
      %235 = arith.cmpi slt, %46, %234 : vector<8x512xi32>
      %236 = arith.andi %231, %235 : vector<8x512xi1>
      %237 = arith.mulf %217, %217 : vector<8x512xf32>
      %cst_75 = arith.constant 0.000000e+00 : f32
      %238 = vector.broadcast %cst_75 : f32 to vector<8x512xf32>
      %239 = arith.select %227, %237, %238 : vector<8x512xi1>, vector<8x512xf32>
      %240 = arith.addf %212, %239 : vector<8x512xf32>
      %241 = arith.mulf %218, %218 : vector<8x512xf32>
      %cst_76 = arith.constant 0.000000e+00 : f32
      %242 = vector.broadcast %cst_76 : f32 to vector<8x512xf32>
      %243 = arith.select %236, %241, %242 : vector<8x512xi1>, vector<8x512xf32>
      %244 = arith.addf %216, %243 : vector<8x512xf32>
      %c0_77 = arith.constant 0 : index
      %c3584 = arith.constant 3584 : index
      %245 = vector.load %arg5[%c0_77, %c3584] : memref<8x4096xf32, #tpu.memory_space<vmem>>, vector<8x512xf32>
      %c0_78 = arith.constant 0 : index
      %c3584_79 = arith.constant 3584 : index
      %246 = vector.load %arg6[%c0_78, %c3584_79] : memref<8x4096xf32, #tpu.memory_space<vmem>>, vector<8x512xf32>
      %c3584_i32 = arith.constant 3584 : i32
      %247 = vector.broadcast %c3584_i32 : i32 to vector<8x1xi32>
      %248 = arith.subi %27, %247 : vector<8x1xi32>
      %249 = vector.broadcast %248 : vector<8x1xi32> to vector<8x512xi32>
      %250 = arith.cmpi sge, %46, %249 : vector<8x512xi32>
      %c3584_i32_80 = arith.constant 3584 : i32
      %251 = vector.broadcast %c3584_i32_80 : i32 to vector<8x1xi32>
      %252 = arith.subi %33, %251 : vector<8x1xi32>
      %253 = vector.broadcast %252 : vector<8x1xi32> to vector<8x512xi32>
      %254 = arith.cmpi slt, %46, %253 : vector<8x512xi32>
      %255 = arith.andi %250, %254 : vector<8x512xi1>
      %c3584_i32_81 = arith.constant 3584 : i32
      %256 = vector.broadcast %c3584_i32_81 : i32 to vector<8x1xi32>
      %257 = arith.subi %39, %256 : vector<8x1xi32>
      %258 = vector.broadcast %257 : vector<8x1xi32> to vector<8x512xi32>
      %259 = arith.cmpi sge, %46, %258 : vector<8x512xi32>
      %c3584_i32_82 = arith.constant 3584 : i32
      %260 = vector.broadcast %c3584_i32_82 : i32 to vector<8x1xi32>
      %261 = arith.subi %45, %260 : vector<8x1xi32>
      %262 = vector.broadcast %261 : vector<8x1xi32> to vector<8x512xi32>
      %263 = arith.cmpi slt, %46, %262 : vector<8x512xi32>
      %264 = arith.andi %259, %263 : vector<8x512xi1>
      %265 = arith.mulf %245, %245 : vector<8x512xf32>
      %cst_83 = arith.constant 0.000000e+00 : f32
      %266 = vector.broadcast %cst_83 : f32 to vector<8x512xf32>
      %267 = arith.select %255, %265, %266 : vector<8x512xi1>, vector<8x512xf32>
      %268 = arith.addf %240, %267 : vector<8x512xf32>
      %269 = arith.mulf %246, %246 : vector<8x512xf32>
      %cst_84 = arith.constant 0.000000e+00 : f32
      %270 = vector.broadcast %cst_84 : f32 to vector<8x512xf32>
      %271 = arith.select %264, %269, %270 : vector<8x512xi1>, vector<8x512xf32>
      %272 = arith.addf %244, %271 : vector<8x512xf32>
      %c0_85 = arith.constant 0 : index
      %c0_86 = arith.constant 0 : index
      %273 = vector.load %arg9[%c0_85, %c0_86] : memref<8x512xf32, #tpu.memory_space<vmem>>, vector<8x512xf32>
      tpu.vector_store %arg9[%c0_85, %c0_86], %268 {strides = array<i32>} : memref<8x512xf32, #tpu.memory_space<vmem>>, vector<8x512xf32>,
      %c0_87 = arith.constant 0 : index
      %c0_88 = arith.constant 0 : index
      %274 = vector.load %arg10[%c0_87, %c0_88] : memref<8x512xf32, #tpu.memory_space<vmem>>, vector<8x512xf32>
      tpu.vector_store %arg10[%c0_87, %c0_88], %272 {strides = array<i32>} : memref<8x512xf32, #tpu.memory_space<vmem>>, vector<8x512xf32>,
    } else {
    }
    %c0_i32_6 = arith.constant 0 : i32
    %20 = arith.cmpi eq, %arg2, %c0_i32_6 : i32
    %21 = arith.extui %20 : i1 to i32
    %c0_i32_7 = arith.constant 0 : i32
    %22 = arith.cmpi ne, %21, %c0_i32_7 : i32
    scf.if %22 {
      %c0 = arith.constant 0 : index
      %c0_8 = arith.constant 0 : index
      %23 = vector.load %arg9[%c0, %c0_8] : memref<8x512xf32, #tpu.memory_space<vmem>>, vector<8x512xf32>
      %cst = arith.constant dense<0.000000e+00> : vector<8xf32>
      %24 = vector.multi_reduction <add>, %23, %cst [1] : vector<8x512xf32> to vector<8xf32>
      %25 = vector.shape_cast %24 : vector<8xf32> to vector<8x1xf32>
      %c0_9 = arith.constant 0 : index
      %c0_10 = arith.constant 0 : index
      %c0_11 = arith.constant 0 : index
      %26 = vector.load %arg7[%c0_9, %c0_10, %c0_11] : memref<1x8x1xf32, #tpu.memory_space<vmem>>, vector<1x8x1xf32>
      %27 = vector.shape_cast %26 : vector<1x8x1xf32> to vector<8x1xf32>
      %28 = vector.shape_cast %25 : vector<8x1xf32> to vector<1x8x1xf32>
      tpu.vector_store %arg7[%c0_9, %c0_10, %c0_11], %28 {strides = array<i32>} : memref<1x8x1xf32, #tpu.memory_space<vmem>>, vector<1x8x1xf32>,
      %c0_12 = arith.constant 0 : index
      %c0_13 = arith.constant 0 : index
      %29 = vector.load %arg10[%c0_12, %c0_13] : memref<8x512xf32, #tpu.memory_space<vmem>>, vector<8x512xf32>
      %cst_14 = arith.constant dense<0.000000e+00> : vector<8xf32>
      %30 = vector.multi_reduction <add>, %29, %cst_14 [1] : vector<8x512xf32> to vector<8xf32>
      %31 = vector.shape_cast %30 : vector<8xf32> to vector<8x1xf32>
      %c0_15 = arith.constant 0 : index
      %c0_16 = arith.constant 0 : index
      %c0_17 = arith.constant 0 : index
      %32 = vector.load %arg8[%c0_15, %c0_16, %c0_17] : memref<1x8x1xf32, #tpu.memory_space<vmem>>, vector<1x8x1xf32>
      %33 = vector.shape_cast %32 : vector<1x8x1xf32> to vector<8x1xf32>
      %34 = vector.shape_cast %31 : vector<8x1xf32> to vector<1x8x1xf32>
      tpu.vector_store %arg8[%c0_15, %c0_16, %c0_17], %34 {strides = array<i32>} : memref<1x8x1xf32, #tpu.memory_space<vmem>>, vector<1x8x1xf32>,
    } else {
    }
    return
  }
  func.func @transform_0(%arg0: i32, %arg1: i32, %arg2: i32, %arg3: memref<1xi32, #tpu.memory_space<smem>>) -> (i32, i32) {
    %c0_i32 = arith.constant 0 : i32
    %c0_i32_0 = arith.constant 0 : i32
    return %arg0, %c0_i32 : i32, i32
  }
  func.func @transform_1(%arg0: i32, %arg1: i32, %arg2: i32, %arg3: memref<1xi32, #tpu.memory_space<smem>>) -> (i32, i32) {
    %c1_i32 = arith.constant 1 : i32
    %0 = arith.muli %arg1, %c1_i32 : i32
    %1 = arith.addi %0, %arg2 : i32
    %c0_i32 = arith.constant 0 : i32
    %2 = arith.minsi %1, %c0_i32 : i32
    %c0_i32_0 = arith.constant 0 : i32
    return %arg0, %2 : i32, i32
  }
  func.func @transform_2(%arg0: i32, %arg1: i32, %arg2: i32, %arg3: memref<1xi32, #tpu.memory_space<smem>>) -> (i32, i32) {
    %c1_i32 = arith.constant 1 : i32
    %0 = arith.muli %arg1, %c1_i32 : i32
    %1 = arith.addi %0, %arg2 : i32
    %c0_i32 = arith.constant 0 : i32
    %2 = arith.minsi %1, %c0_i32 : i32
    %c0_i32_0 = arith.constant 0 : i32
    return %arg0, %2 : i32, i32
  }
  func.func @transform_3(%arg0: i32, %arg1: i32, %arg2: i32, %arg3: memref<1xi32, #tpu.memory_space<smem>>) -> (i32, i32, i32) {
    %c0_i32 = arith.constant 0 : i32
    %c0_i32_0 = arith.constant 0 : i32
    return %arg1, %arg0, %c0_i32 : i32, i32, i32
  }
  func.func @transform_4(%arg0: i32, %arg1: i32, %arg2: i32, %arg3: memref<1xi32, #tpu.memory_space<smem>>) -> (i32, i32, i32) {
    %c0_i32 = arith.constant 0 : i32
    %c0_i32_0 = arith.constant 0 : i32
    return %arg1, %arg0, %c0_i32 : i32, i32, i32
  }
}

</mosaic_0001>

<llo_original>
// kernel: tpu_custom_call.1
$region0: #{tpu_custom_call.1}
  #allocation0 [shape = 'u32[]', space=smem, size = 0x4, offset = 0x4, fixed_abs, tag = 'smem constant byte address 0x4 - core index']
  #allocation1 [shape = 'u32[72,128]{1,0:T(1,128)}', space=vmem, size = 0x9000, scoped, tag = 'internal scratch']
  #allocation2 [shape = 'f32[8,512]{1,0:T(8,128)}', space=vmem, size = 0x4000, scoped, tag = 'scratch operand']
  #allocation3 [shape = 'f32[8,512]{1,0:T(8,128)}', space=vmem, size = 0x4000, scoped, tag = 'scratch operand']
  #allocation4 [shape = 's32[1]{0}', space=sflag, size = 0x4, scoped, tag = 'scoped memory for tpu_custom_call.1']
  #allocation5 [shape = 's32[1]{0:T(128)S(6)}', space=smem, size = 0x200, scoped, tag = 'prefetched SMEM operand 0']
  %s0 = inlined_call_operand.<no memory space> [shape: s32[1], index: 0, kind: input, shape index: {}]
  %s1 = inlined_call_operand.vmem [shape: s32[8,1], index: 1, kind: input, shape index: {}]
  %s2 = inlined_call_operand.hbm [shape: f32[8,4096], index: 2, kind: input, shape index: {}]
  %s3 = inlined_call_operand.hbm [shape: f32[8,4096], index: 3, kind: input, shape index: {}]
  %s4 = inlined_call_operand.vmem [shape: f32[1,8,1], index: 4, kind: output, shape index: {0}]
  %s5 = inlined_call_operand.vmem [shape: f32[1,8,1], index: 5, kind: output, shape index: {1}]
  %6 = xla_tuple %s4, %s5
  %s7 = sld [smem:[#allocation0]]
  $region54: #{tpu_custom_call.1} parent=0
    _
  %s9 = ssub.s32 1, %s7
  %s10 = scalar_select 0, %s9, %s7
  %11 = sst [smem:[#allocation5]] %s0
  $region1: #{tpu_custom_call.1} parent=0
    #allocation6 [shape = 'u8[131072]{0}', space=vmem, size = 0x20000, scoped, tag = 'input window, operand 2, single buffered']
    #allocation7 [shape = 's32[1]{0}', space=sflag, size = 0x4, scoped, tag = 'scoped memory for tpu_custom_call.1']
    #allocation8 [shape = 'u8[131072]{0}', space=vmem, size = 0x20000, scoped, tag = 'input window, operand 3, single buffered']
    #allocation9 [shape = 's32[1]{0}', space=sflag, size = 0x4, scoped, tag = 'scoped memory for tpu_custom_call.1']
    %12 = vsyncpa [#allocation7], 0
    %13 = vsyncpa [#allocation9], 0
    // Predicated region
    $region2: #{tpu_custom_call.1} parent=1 // pred_check
      _
    $region3: #{tpu_custom_call.1} parent=1 // pred_check_branch
      %15 = sbr.rel (0) target = $region5
    $region4: #{tpu_custom_call.1} parent=1 // pred_region
      _
    $region5: #{tpu_custom_call.1} parent=1 // pred_fallthru
      _
    // Predicated region
    $region6: #{tpu_custom_call.1} parent=1 // pred_check
      _
    $region7: #{tpu_custom_call.1} parent=1 // pred_check_branch
      %17 = sbr.rel (0) target = $region9
    $region8: #{tpu_custom_call.1} parent=1 // pred_region
      %s18 = sadd.s32 0, 0
      %p19 = scmp.lt.s32.totalorder %s18, 0
      %s20 = scalar_select %p19, %s18, 0
      %s21 = smul.u32 32, %s20
      %23 = vsyncadd [#allocation7], 0
      %s24 = smul.addr %s21, 8
      %s25 = scalar_lea.hbm %s2, %s24
      %s27 = sshll.u32 %s25, 4
      %s28 = int_to_ptr.hbm [resolvable:$true] %s27
      %s29 = sshll.u32 [#allocation6], 4
      %s30 = int_to_ptr.vmem [resolvable:$true] %s29
      %32 = dma.hbm_to_vmem [thread:$0]  %s28, 4096, %s30, [#allocation7]
    $region9: #{tpu_custom_call.1} parent=1 // pred_fallthru
      _
    // Predicated region
    $region10: #{tpu_custom_call.1} parent=1 // pred_check
      _
    $region11: #{tpu_custom_call.1} parent=1 // pred_check_branch
      %34 = sbr.rel (0) target = $region13
    $region12: #{tpu_custom_call.1} parent=1 // pred_region
      %s35 = sadd.s32 0, 0
      %p36 = scmp.lt.s32.totalorder %s35, 0
      %s37 = scalar_select %p36, %s35, 0
      %s38 = smul.u32 32, %s37
      %40 = vsyncadd [#allocation9], 0
      %s41 = smul.addr %s38, 8
      %s42 = scalar_lea.hbm %s3, %s41
      %s44 = sshll.u32 %s42, 4
      %s45 = int_to_ptr.hbm [resolvable:$true] %s44
      %s46 = sshll.u32 [#allocation8], 4
      %s47 = int_to_ptr.vmem [resolvable:$true] %s46
      %49 = dma.hbm_to_vmem [thread:$0]  %s45, 4096, %s47, [#allocation9]
    $region13: #{tpu_custom_call.1} parent=1 // pred_fallthru
      _
    // Predicated region
    $region14: #{tpu_custom_call.1} parent=1 // pred_check
      _
    $region15: #{tpu_custom_call.1} parent=1 // pred_check_branch
      %51 = sbr.rel (0) target = $region17
    $region16: #{tpu_custom_call.1} parent=1 // pred_region
      %53 = dma.done [#allocation7], 4096
    $region17: #{tpu_custom_call.1} parent=1 // pred_fallthru
      _
    // Predicated region
    $region18: #{tpu_custom_call.1} parent=1 // pred_check
      _
    $region19: #{tpu_custom_call.1} parent=1 // pred_check_branch
      %55 = sbr.rel (0) target = $region21
    $region20: #{tpu_custom_call.1} parent=1 // pred_region
      %57 = dma.done [#allocation9], 4096
    $region21: #{tpu_custom_call.1} parent=1 // pred_fallthru
      _
    %s58 = sadd.s32 0, 0
    %p59 = scmp.lt.s32.totalorder %s58, 0
    %s60 = scalar_select %p59, %s58, 0
    %s61 = smul.u32 32, %s60
    %s62 = sadd.s32 0, 0
    %p63 = scmp.lt.s32.totalorder %s62, 0
    %s64 = scalar_select %p63, %s62, 0
    %s65 = smul.u32 32, %s64
    %s66 = sadd.s32 0, 0
    %s67 = smul.u32 %s66, 4096
    %p68 = scmp.eq.s32.totalorder 0, 0
    // Predicated region
    $region22: #{tpu_custom_call.1} parent=1 // pred_check
      %p69 = pneg %p68
    $region23: #{tpu_custom_call.1} parent=1 // pred_check_branch
      %71 = sbr.rel (%p69) target = $region25
    $region24: #{tpu_custom_call.1} parent=1 // pred_region
      %72 = vst [vmem:[#allocation2] sm:$0xff] 0.0
      %73 = vst [vmem:[#allocation2 + $0x8] sm:$0xff] 0.0
      %74 = vst [vmem:[#allocation2 + $0x10] sm:$0xff] 0.0
      %75 = vst [vmem:[#allocation2 + $0x18] sm:$0xff] 0.0
      %76 = vst [vmem:[#allocation3] sm:$0xff] 0.0
      %77 = vst [vmem:[#allocation3 + $0x8] sm:$0xff] 0.0
      %78 = vst [vmem:[#allocation3 + $0x10] sm:$0xff] 0.0
      %79 = vst [vmem:[#allocation3 + $0x18] sm:$0xff] 0.0
    $region25: #{tpu_custom_call.1} parent=1 // pred_fallthru
      _
    %s80 = sld [smem:[#allocation5]]
    %p81 = scmp.ge.s32.totalorder %s67, %s80
    %s82 = sadd.s32 %s67, 4096
    %s83 = ssub.s32 4096, %s80
    %p84 = scmp.le.s32.totalorder %s82, %s83
    %p85 = pnand %p81, %p84
    %p86 = pneg %p85
    %p87 = scmp.lt.s32.totalorder %s66, 1
    // Predicated region
    $region26: #{tpu_custom_call.1} parent=1 // pred_check
      _
    $region27: #{tpu_custom_call.1} parent=1 // pred_check_branch
      %89 = sbr.rel (%p85) target = $region29
    $region28: #{tpu_custom_call.1} parent=1 // pred_region
      %v90 = vld [vmem:[#allocation2] sm:$0xff]
      %v91 = vld [vmem:[#allocation2 + $0x8] sm:$0xff]
      %v92 = vld [vmem:[#allocation2 + $0x10] sm:$0xff]
      %v93 = vld [vmem:[#allocation2 + $0x18] sm:$0xff]
      %v94 = vld [vmem:[#allocation3] sm:$0xff]
      %v95 = vld [vmem:[#allocation3 + $0x8] sm:$0xff]
      %v96 = vld [vmem:[#allocation3 + $0x10] sm:$0xff]
      %v97 = vld [vmem:[#allocation3 + $0x18] sm:$0xff]
      %v98 = vld [vmem:[#allocation6] sm:$0xff]
      %v99 = vld [vmem:[#allocation6 + $0x8] sm:$0xff]
      %v100 = vld [vmem:[#allocation6 + $0x10] sm:$0xff]
      %v101 = vld [vmem:[#allocation6 + $0x18] sm:$0xff]
      %v102 = vld [vmem:[#allocation8] sm:$0xff]
      %v103 = vld [vmem:[#allocation8 + $0x8] sm:$0xff]
      %v104 = vld [vmem:[#allocation8 + $0x10] sm:$0xff]
      %v105 = vld [vmem:[#allocation8 + $0x18] sm:$0xff]
      %v106 = vmul.f32 %v98, %v98
      %v107 = vmul.f32 %v99, %v99
      %v108 = vmul.f32 %v100, %v100
      %v109 = vmul.f32 %v101, %v101
      %v110 = vadd.f32 %v90, %v106
      %v111 = vadd.f32 %v91, %v107
      %v112 = vadd.f32 %v92, %v108
      %v113 = vadd.f32 %v93, %v109
      %v114 = vmul.f32 %v102, %v102
      %v115 = vmul.f32 %v103, %v103
      %v116 = vmul.f32 %v104, %v104
      %v117 = vmul.f32 %v105, %v105
      %v118 = vadd.f32 %v94, %v114
      %v119 = vadd.f32 %v95, %v115
      %v120 = vadd.f32 %v96, %v116
      %v121 = vadd.f32 %v97, %v117
      %v122 = vld [vmem:[#allocation6 + $0x20] sm:$0xff]
      %v123 = vld [vmem:[#allocation6 + $0x28] sm:$0xff]
      %v124 = vld [vmem:[#allocation6 + $0x30] sm:$0xff]
      %v125 = vld [vmem:[#allocation6 + $0x38] sm:$0xff]
      %v126 = vld [vmem:[#allocation8 + $0x20] sm:$0xff]
      %v127 = vld [vmem:[#allocation8 + $0x28] sm:$0xff]
      %v128 = vld [vmem:[#allocation8 + $0x30] sm:$0xff]
      %v129 = vld [vmem:[#allocation8 + $0x38] sm:$0xff]
      %v130 = vmul.f32 %v122, %v122
      %v131 = vmul.f32 %v123, %v123
      %v132 = vmul.f32 %v124, %v124
      %v133 = vmul.f32 %v125, %v125
      %v134 = vadd.f32 %v110, %v130
      %v135 = vadd.f32 %v111, %v131
      %v136 = vadd.f32 %v112, %v132
      %v137 = vadd.f32 %v113, %v133
      %v138 = vmul.f32 %v126, %v126
      %v139 = vmul.f32 %v127, %v127
      %v140 = vmul.f32 %v128, %v128
      %v141 = vmul.f32 %v129, %v129
      %v142 = vadd.f32 %v118, %v138
      %v143 = vadd.f32 %v119, %v139
      %v144 = vadd.f32 %v120, %v140
      %v145 = vadd.f32 %v121, %v141
      %v146 = vld [vmem:[#allocation6 + $0x40] sm:$0xff]
      %v147 = vld [vmem:[#allocation6 + $0x48] sm:$0xff]
      %v148 = vld [vmem:[#allocation6 + $0x50] sm:$0xff]
      %v149 = vld [vmem:[#allocation6 + $0x58] sm:$0xff]
      %v150 = vld [vmem:[#allocation8 + $0x40] sm:$0xff]
      %v151 = vld [vmem:[#allocation8 + $0x48] sm:$0xff]
      %v152 = vld [vmem:[#allocation8 + $0x50] sm:$0xff]
      %v153 = vld [vmem:[#allocation8 + $0x58] sm:$0xff]
      %v154 = vmul.f32 %v146, %v146
      %v155 = vmul.f32 %v147, %v147
      %v156 = vmul.f32 %v148, %v148
      %v157 = vmul.f32 %v149, %v149
      %v158 = vadd.f32 %v134, %v154
      %v159 = vadd.f32 %v135, %v155
      %v160 = vadd.f32 %v136, %v156
      %v161 = vadd.f32 %v137, %v157
      %v162 = vmul.f32 %v150, %v150
      %v163 = vmul.f32 %v151, %v151
      %v164 = vmul.f32 %v152, %v152
      %v165 = vmul.f32 %v153, %v153
      %v166 = vadd.f32 %v142, %v162
      %v167 = vadd.f32 %v143, %v163
      %v168 = vadd.f32 %v144, %v164
      %v169 = vadd.f32 %v145, %v165
      %v170 = vld [vmem:[#allocation6 + $0x60] sm:$0xff]
      %v171 = vld [vmem:[#allocation6 + $0x68] sm:$0xff]
      %v172 = vld [vmem:[#allocation6 + $0x70] sm:$0xff]
      %v173 = vld [vmem:[#allocation6 + $0x78] sm:$0xff]
      %v174 = vld [vmem:[#allocation8 + $0x60] sm:$0xff]
      %v175 = vld [vmem:[#allocation8 + $0x68] sm:$0xff]
      %v176 = vld [vmem:[#allocation8 + $0x70] sm:$0xff]
      %v177 = vld [vmem:[#allocation8 + $0x78] sm:$0xff]
      %v178 = vmul.f32 %v170, %v170
      %v179 = vmul.f32 %v171, %v171
      %v180 = vmul.f32 %v172, %v172
      %v181 = vmul.f32 %v173, %v173
      %v182 = vadd.f32 %v158, %v178
      %v183 = vadd.f32 %v159, %v179
      %v184 = vadd.f32 %v160, %v180
      %v185 = vadd.f32 %v161, %v181
      %v186 = vmul.f32 %v174, %v174
      %v187 = vmul.f32 %v175, %v175
      %v188 = vmul.f32 %v176, %v176
      %v189 = vmul.f32 %v177, %v177
      %v190 = vadd.f32 %v166, %v186
      %v191 = vadd.f32 %v167, %v187
      %v192 = vadd.f32 %v168, %v188
      %v193 = vadd.f32 %v169, %v189
      %v194 = vld [vmem:[#allocation6 + $0x80] sm:$0xff]
      %v195 = vld [vmem:[#allocation6 + $0x88] sm:$0xff]
      %v196 = vld [vmem:[#allocation6 + $0x90] sm:$0xff]
      %v197 = vld [vmem:[#allocation6 + $0x98] sm:$0xff]
      %v198 = vld [vmem:[#allocation8 + $0x80] sm:$0xff]
      %v199 = vld [vmem:[#allocation8 + $0x88] sm:$0xff]
      %v200 = vld [vmem:[#allocation8 + $0x90] sm:$0xff]
      %v201 = vld [vmem:[#allocation8 + $0x98] sm:$0xff]
      %v202 = vmul.f32 %v194, %v194
      %v203 = vmul.f32 %v195, %v195
      %v204 = vmul.f32 %v196, %v196
      %v205 = vmul.f32 %v197, %v197
      %v206 = vadd.f32 %v182, %v202
      %v207 = vadd.f32 %v183, %v203
      %v208 = vadd.f32 %v184, %v204
      %v209 = vadd.f32 %v185, %v205
      %v210 = vmul.f32 %v198, %v198
      %v211 = vmul.f32 %v199, %v199
      %v212 = vmul.f32 %v200, %v200
      %v213 = vmul.f32 %v201, %v201
      %v214 = vadd.f32 %v190, %v210
      %v215 = vadd.f32 %v191, %v211
      %v216 = vadd.f32 %v192, %v212
      %v217 = vadd.f32 %v193, %v213
      %v218 = vld [vmem:[#allocation6 + $0xa0] sm:$0xff]
      %v219 = vld [vmem:[#allocation6 + $0xa8] sm:$0xff]
      %v220 = vld [vmem:[#allocation6 + $0xb0] sm:$0xff]
      %v221 = vld [vmem:[#allocation6 + $0xb8] sm:$0xff]
      %v222 = vld [vmem:[#allocation8 + $0xa0] sm:$0xff]
      %v223 = vld [vmem:[#allocation8 + $0xa8] sm:$0xff]
      %v224 = vld [vmem:[#allocation8 + $0xb0] sm:$0xff]
      %v225 = vld [vmem:[#allocation8 + $0xb8] sm:$0xff]
      %v226 = vmul.f32 %v218, %v218
      %v227 = vmul.f32 %v219, %v219
      %v228 = vmul.f32 %v220, %v220
      %v229 = vmul.f32 %v221, %v221
      %v230 = vadd.f32 %v206, %v226
      %v231 = vadd.f32 %v207, %v227
      %v232 = vadd.f32 %v208, %v228
      %v233 = vadd.f32 %v209, %v229
      %v234 = vmul.f32 %v222, %v222
      %v235 = vmul.f32 %v223, %v223
      %v236 = vmul.f32 %v224, %v224
      %v237 = vmul.f32 %v225, %v225
      %v238 = vadd.f32 %v214, %v234
      %v239 = vadd.f32 %v215, %v235
      %v240 = vadd.f32 %v216, %v236
      %v241 = vadd.f32 %v217, %v237
      %v242 = vld [vmem:[#allocation6 + $0xc0] sm:$0xff]
      %v243 = vld [vmem:[#allocation6 + $0xc8] sm:$0xff]
      %v244 = vld [vmem:[#allocation6 + $0xd0] sm:$0xff]
      %v245 = vld [vmem:[#allocation6 + $0xd8] sm:$0xff]
      %v246 = vld [vmem:[#allocation8 + $0xc0] sm:$0xff]
      %v247 = vld [vmem:[#allocation8 + $0xc8] sm:$0xff]
      %v248 = vld [vmem:[#allocation8 + $0xd0] sm:$0xff]
      %v249 = vld [vmem:[#allocation8 + $0xd8] sm:$0xff]
      %v250 = vmul.f32 %v242, %v242
      %v251 = vmul.f32 %v243, %v243
      %v252 = vmul.f32 %v244, %v244
      %v253 = vmul.f32 %v245, %v245
      %v254 = vadd.f32 %v230, %v250
      %v255 = vadd.f32 %v231, %v251
      %v256 = vadd.f32 %v232, %v252
      %v257 = vadd.f32 %v233, %v253
      %v258 = vmul.f32 %v246, %v246
      %v259 = vmul.f32 %v247, %v247
      %v260 = vmul.f32 %v248, %v248
      %v261 = vmul.f32 %v249, %v249
      %v262 = vadd.f32 %v238, %v258
      %v263 = vadd.f32 %v239, %v259
      %v264 = vadd.f32 %v240, %v260
      %v265 = vadd.f32 %v241, %v261
      %v266 = vld [vmem:[#allocation6 + $0xe0] sm:$0xff]
      %v267 = vld [vmem:[#allocation6 + $0xe8] sm:$0xff]
      %v268 = vld [vmem:[#allocation6 + $0xf0] sm:$0xff]
      %v269 = vld [vmem:[#allocation6 + $0xf8] sm:$0xff]
      %v270 = vld [vmem:[#allocation8 + $0xe0] sm:$0xff]
      %v271 = vld [vmem:[#allocation8 + $0xe8] sm:$0xff]
      %v272 = vld [vmem:[#allocation8 + $0xf0] sm:$0xff]
      %v273 = vld [vmem:[#allocation8 + $0xf8] sm:$0xff]
      %v274 = vmul.f32 %v266, %v266
      %v275 = vmul.f32 %v267, %v267
      %v276 = vmul.f32 %v268, %v268
      %v277 = vmul.f32 %v269, %v269
      %v278 = vadd.f32 %v254, %v274
      %v279 = vadd.f32 %v255, %v275
      %v280 = vadd.f32 %v256, %v276
      %v281 = vadd.f32 %v257, %v277
      %v282 = vmul.f32 %v270, %v270
      %v283 = vmul.f32 %v271, %v271
      %v284 = vmul.f32 %v272, %v272
      %v285 = vmul.f32 %v273, %v273
      %v286 = vadd.f32 %v262, %v282
      %v287 = vadd.f32 %v263, %v283
      %v288 = vadd.f32 %v264, %v284
      %v289 = vadd.f32 %v265, %v285
      %290 = vst [vmem:[#allocation2] sm:$0xff] %v278
      %291 = vst [vmem:[#allocation2 + $0x8] sm:$0xff] %v279
      %292 = vst [vmem:[#allocation2 + $0x10] sm:$0xff] %v280
      %293 = vst [vmem:[#allocation2 + $0x18] sm:$0xff] %v281
      %294 = vst [vmem:[#allocation3] sm:$0xff] %v286
      %295 = vst [vmem:[#allocation3 + $0x8] sm:$0xff] %v287
      %296 = vst [vmem:[#allocation3 + $0x10] sm:$0xff] %v288
      %297 = vst [vmem:[#allocation3 + $0x18] sm:$0xff] %v289
    $region29: #{tpu_custom_call.1} parent=1 // pred_fallthru
      _
    %p298 = pneg %p86
    %p299 = pnand %p298, %p87
    %p300 = pneg %p299
    // Predicated region
    $region30: #{tpu_custom_call.1} parent=1 // pred_check
      _
    $region31: #{tpu_custom_call.1} parent=1 // pred_check_branch
      %302 = sbr.rel (%p299) target = $region33
    $region32: #{tpu_custom_call.1} parent=1 // pred_region
      %v303 = vld [vmem:[%s1] sm:$0xff]
      %vm304 = vcmp.gt.s32.totalorder %v303, 0
      %v305 = vsel %vm304, %v303, 0
      %v306 = vstv %s67
      %v307 = vsub.s32 %v305, %v306
      %vm308 = vcmp.lt.s32.totalorder %v303, 0
      %v309 = vsel %vm308, %v303, 0
      %v310 = vadd.s32 %v309, 4096
      %v311 = vsub.s32 %v310, %v306
      %v312 = vsub.s32 0, %v303
      %vm313 = vcmp.gt.s32.totalorder %v312, 0
      %v314 = vsel %vm313, %v312, 0
      %v315 = vsub.s32 %v314, %v306
      %v316 = vsub.s32 4096, %v305
      %v317 = vsub.s32 %v316, %v306
      %v318 = vlaneseq
      %v319 = vand.u32 %v318, 127
      %v320 = vadd.s32 %v319, 128
      %v321 = vadd.s32 %v319, 256
      %v322 = vadd.s32 %v319, 384
      %v323 = vld [vmem:[#allocation2] sm:$0xff]
      %v324 = vld [vmem:[#allocation2 + $0x8] sm:$0xff]
      %v325 = vld [vmem:[#allocation2 + $0x10] sm:$0xff]
      %v326 = vld [vmem:[#allocation2 + $0x18] sm:$0xff]
      %v327 = vld [vmem:[#allocation3] sm:$0xff]
      %v328 = vld [vmem:[#allocation3 + $0x8] sm:$0xff]
      %v329 = vld [vmem:[#allocation3 + $0x10] sm:$0xff]
      %v330 = vld [vmem:[#allocation3 + $0x18] sm:$0xff]
      %v331 = vld [vmem:[#allocation6] sm:$0xff]
      %v332 = vld [vmem:[#allocation6 + $0x8] sm:$0xff]
      %v333 = vld [vmem:[#allocation6 + $0x10] sm:$0xff]
      %v334 = vld [vmem:[#allocation6 + $0x18] sm:$0xff]
      %v335 = vld [vmem:[#allocation8] sm:$0xff]
      %v336 = vld [vmem:[#allocation8 + $0x8] sm:$0xff]
      %v337 = vld [vmem:[#allocation8 + $0x10] sm:$0xff]
      %v338 = vld [vmem:[#allocation8 + $0x18] sm:$0xff]
      %339 = vset.pattern.permute.xlu0 0
      %340 = vperm.xlu0 %339, %v307
      %v341 = vpop.permute.xlu0 %340
      %vm342 = vcmp.ge.s32.totalorder %v319, %v341
      %vm343 = vcmp.ge.s32.totalorder %v320, %v341
      %vm344 = vcmp.ge.s32.totalorder %v321, %v341
      %vm345 = vcmp.ge.s32.totalorder %v322, %v341
      %346 = vset.pattern.permute.xlu0 0
      %347 = vperm.xlu0 %346, %v311
      %v348 = vpop.permute.xlu0 %347
      %vm349 = vcmp.lt.s32.totalorder %v319, %v348
      %vm350 = vcmp.lt.s32.totalorder %v320, %v348
      %vm351 = vcmp.lt.s32.totalorder %v321, %v348
      %vm352 = vcmp.lt.s32.totalorder %v322, %v348
      %vm353 = vmand %vm342, %vm349
      %vm354 = vmand %vm343, %vm350
      %vm355 = vmand %vm344, %vm351
      %vm356 = vmand %vm345, %vm352
      %357 = vset.pattern.permute.xlu0 0
      %358 = vperm.xlu0 %357, %v315
      %v359 = vpop.permute.xlu0 %358
      %vm360 = vcmp.ge.s32.totalorder %v319, %v359
      %vm361 = vcmp.ge.s32.totalorder %v320, %v359
      %vm362 = vcmp.ge.s32.totalorder %v321, %v359
      %vm363 = vcmp.ge.s32.totalorder %v322, %v359
      %364 = vset.pattern.permute.xlu0 0
      %365 = vperm.xlu0 %364, %v317
      %v366 = vpop.permute.xlu0 %365
      %vm367 = vcmp.lt.s32.totalorder %v319, %v366
      %vm368 = vcmp.lt.s32.totalorder %v320, %v366
      %vm369 = vcmp.lt.s32.totalorder %v321, %v366
      %vm370 = vcmp.lt.s32.totalorder %v322, %v366
      %vm371 = vmand %vm360, %vm367
      %vm372 = vmand %vm361, %vm368
      %vm373 = vmand %vm362, %vm369
      %vm374 = vmand %vm363, %vm370
      %v375 = vmul.f32 %v331, %v331
      %v376 = vmul.f32 %v332, %v332
      %v377 = vmul.f32 %v333, %v333
      %v378 = vmul.f32 %v334, %v334
      %v379 = vsel %vm353, %v375, 0.0
      %v380 = vsel %vm354, %v376, 0.0
      %v381 = vsel %vm355, %v377, 0.0
      %v382 = vsel %vm356, %v378, 0.0
      %v383 = vadd.f32 %v323, %v379
      %v384 = vadd.f32 %v324, %v380
      %v385 = vadd.f32 %v325, %v381
      %v386 = vadd.f32 %v326, %v382
      %v387 = vmul.f32 %v335, %v335
      %v388 = vmul.f32 %v336, %v336
      %v389 = vmul.f32 %v337, %v337
      %v390 = vmul.f32 %v338, %v338
      %v391 = vsel %vm371, %v387, 0.0
      %v392 = vsel %vm372, %v388, 0.0
      %v393 = vsel %vm373, %v389, 0.0
      %v394 = vsel %vm374, %v390, 0.0
      %v395 = vadd.f32 %v327, %v391
      %v396 = vadd.f32 %v328, %v392
      %v397 = vadd.f32 %v329, %v393
      %v398 = vadd.f32 %v330, %v394
      %v399 = vld [vmem:[#allocation6 + $0x20] sm:$0xff]
      %v400 = vld [vmem:[#allocation6 + $0x28] sm:$0xff]
      %v401 = vld [vmem:[#allocation6 + $0x30] sm:$0xff]
      %v402 = vld [vmem:[#allocation6 + $0x38] sm:$0xff]
      %v403 = vld [vmem:[#allocation8 + $0x20] sm:$0xff]
      %v404 = vld [vmem:[#allocation8 + $0x28] sm:$0xff]
      %v405 = vld [vmem:[#allocation8 + $0x30] sm:$0xff]
      %v406 = vld [vmem:[#allocation8 + $0x38] sm:$0xff]
      %v407 = vsub.s32 %v307, 512
      %408 = vset.pattern.permute.xlu0 0
      %409 = vperm.xlu0 %408, %v407
      %v410 = vpop.permute.xlu0 %409
      %vm411 = vcmp.ge.s32.totalorder %v319, %v410
      %vm412 = vcmp.ge.s32.totalorder %v320, %v410
      %vm413 = vcmp.ge.s32.totalorder %v321, %v410
      %vm414 = vcmp.ge.s32.totalorder %v322, %v410
      %v415 = vsub.s32 %v311, 512
      %416 = vset.pattern.permute.xlu0 0
      %417 = vperm.xlu0 %416, %v415
      %v418 = vpop.permute.xlu0 %417
      %vm419 = vcmp.lt.s32.totalorder %v319, %v418
      %vm420 = vcmp.lt.s32.totalorder %v320, %v418
      %vm421 = vcmp.lt.s32.totalorder %v321, %v418
      %vm422 = vcmp.lt.s32.totalorder %v322, %v418
      %vm423 = vmand %vm411, %vm419
      %vm424 = vmand %vm412, %vm420
      %vm425 = vmand %vm413, %vm421
      %vm426 = vmand %vm414, %vm422
      %v427 = vsub.s32 %v315, 512
      %428 = vset.pattern.permute.xlu0 0
      %429 = vperm.xlu0 %428, %v427
      %v430 = vpop.permute.xlu0 %429
      %vm431 = vcmp.ge.s32.totalorder %v319, %v430
      %vm432 = vcmp.ge.s32.totalorder %v320, %v430
      %vm433 = vcmp.ge.s32.totalorder %v321, %v430
      %vm434 = vcmp.ge.s32.totalorder %v322, %v430
      %v435 = vsub.s32 %v317, 512
      %436 = vset.pattern.permute.xlu0 0
      %437 = vperm.xlu0 %436, %v435
      %v438 = vpop.permute.xlu0 %437
      %vm439 = vcmp.lt.s32.totalorder %v319, %v438
      %vm440 = vcmp.lt.s32.totalorder %v320, %v438
      %vm441 = vcmp.lt.s32.totalorder %v321, %v438
      %vm442 = vcmp.lt.s32.totalorder %v322, %v438
      %vm443 = vmand %vm431, %vm439
      %vm444 = vmand %vm432, %vm440
      %vm445 = vmand %vm433, %vm441
      %vm446 = vmand %vm434, %vm442
      %v447 = vmul.f32 %v399, %v399
      %v448 = vmul.f32 %v400, %v400
      %v449 = vmul.f32 %v401, %v401
      %v450 = vmul.f32 %v402, %v402
      %v451 = vsel %vm423, %v447, 0.0
      %v452 = vsel %vm424, %v448, 0.0
      %v453 = vsel %vm425, %v449, 0.0
      %v454 = vsel %vm426, %v450, 0.0
      %v455 = vadd.f32 %v383, %v451
      %v456 = vadd.f32 %v384, %v452
      %v457 = vadd.f32 %v385, %v453
      %v458 = vadd.f32 %v386, %v454
      %v459 = vmul.f32 %v403, %v403
      %v460 = vmul.f32 %v404, %v404
      %v461 = vmul.f32 %v405, %v405
      %v462 = vmul.f32 %v406, %v406
      %v463 = vsel %vm443, %v459, 0.0
      %v464 = vsel %vm444, %v460, 0.0
      %v465 = vsel %vm445, %v461, 0.0
      %v466 = vsel %vm446, %v462, 0.0
      %v467 = vadd.f32 %v395, %v463
      %v468 = vadd.f32 %v396, %v464
      %v469 = vadd.f32 %v397, %v465
      %v470 = vadd.f32 %v398, %v466
      %v471 = vld [vmem:[#allocation6 + $0x40] sm:$0xff]
      %v472 = vld [vmem:[#allocation6 + $0x48] sm:$0xff]
      %v473 = vld [vmem:[#allocation6 + $0x50] sm:$0xff]
      %v474 = vld [vmem:[#allocation6 + $0x58] sm:$0xff]
      %v475 = vld [vmem:[#allocation8 + $0x40] sm:$0xff]
      %v476 = vld [vmem:[#allocation8 + $0x48] sm:$0xff]
      %v477 = vld [vmem:[#allocation8 + $0x50] sm:$0xff]
      %v478 = vld [vmem:[#allocation8 + $0x58] sm:$0xff]
      %v479 = vsub.s32 %v307, 1024
      %480 = vset.pattern.permute.xlu0 0
      %481 = vperm.xlu0 %480, %v479
      %v482 = vpop.permute.xlu0 %481
      %vm483 = vcmp.ge.s32.totalorder %v319, %v482
      %vm484 = vcmp.ge.s32.totalorder %v320, %v482
      %vm485 = vcmp.ge.s32.totalorder %v321, %v482
      %vm486 = vcmp.ge.s32.totalorder %v322, %v482
      %v487 = vsub.s32 %v311, 1024
      %488 = vset.pattern.permute.xlu0 0
      %489 = vperm.xlu0 %488, %v487
      %v490 = vpop.permute.xlu0 %489
      %vm491 = vcmp.lt.s32.totalorder %v319, %v490
      %vm492 = vcmp.lt.s32.totalorder %v320, %v490
      %vm493 = vcmp.lt.s32.totalorder %v321, %v490
      %vm494 = vcmp.lt.s32.totalorder %v322, %v490
      %vm495 = vmand %vm483, %vm491
      %vm496 = vmand %vm484, %vm492
      %vm497 = vmand %vm485, %vm493
      %vm498 = vmand %vm486, %vm494
      %v499 = vsub.s32 %v315, 1024
      %500 = vset.pattern.permute.xlu0 0
      %501 = vperm.xlu0 %500, %v499
      %v502 = vpop.permute.xlu0 %501
      %vm503 = vcmp.ge.s32.totalorder %v319, %v502
      %vm504 = vcmp.ge.s32.totalorder %v320, %v502
      %vm505 = vcmp.ge.s32.totalorder %v321, %v502
      %vm506 = vcmp.ge.s32.totalorder %v322, %v502
      %v507 = vsub.s32 %v317, 1024
      %508 = vset.pattern.permute.xlu0 0
      %509 = vperm.xlu0 %508, %v507
      %v510 = vpop.permute.xlu0 %509
      %vm511 = vcmp.lt.s32.totalorder %v319, %v510
      %vm512 = vcmp.lt.s32.totalorder %v320, %v510
      %vm513 = vcmp.lt.s32.totalorder %v321, %v510
      %vm514 = vcmp.lt.s32.totalorder %v322, %v510
      %vm515 = vmand %vm503, %vm511
      %vm516 = vmand %vm504, %vm512
      %vm517 = vmand %vm505, %vm513
      %vm518 = vmand %vm506, %vm514
      %v519 = vmul.f32 %v471, %v471
      %v520 = vmul.f32 %v472, %v472
      %v521 = vmul.f32 %v473, %v473
      %v522 = vmul.f32 %v474, %v474
      %v523 = vsel %vm495, %v519, 0.0
      %v524 = vsel %vm496, %v520, 0.0
      %v525 = vsel %vm497, %v521, 0.0
      %v526 = vsel %vm498, %v522, 0.0
      %v527 = vadd.f32 %v455, %v523
      %v528 = vadd.f32 %v456, %v524
      %v529 = vadd.f32 %v457, %v525
      %v530 = vadd.f32 %v458, %v526
      %v531 = vmul.f32 %v475, %v475
      %v532 = vmul.f32 %v476, %v476
      %v533 = vmul.f32 %v477, %v477
      %v534 = vmul.f32 %v478, %v478
      %v535 = vsel %vm515, %v531, 0.0
      %v536 = vsel %vm516, %v532, 0.0
      %v537 = vsel %vm517, %v533, 0.0
      %v538 = vsel %vm518, %v534, 0.0
      %v539 = vadd.f32 %v467, %v535
      %v540 = vadd.f32 %v468, %v536
      %v541 = vadd.f32 %v469, %v537
      %v542 = vadd.f32 %v470, %v538
      %v543 = vld [vmem:[#allocation6 + $0x60] sm:$0xff]
      %v544 = vld [vmem:[#allocation6 + $0x68] sm:$0xff]
      %v545 = vld [vmem:[#allocation6 + $0x70] sm:$0xff]
      %v546 = vld [vmem:[#allocation6 + $0x78] sm:$0xff]
      %v547 = vld [vmem:[#allocation8 + $0x60] sm:$0xff]
      %v548 = vld [vmem:[#allocation8 + $0x68] sm:$0xff]
      %v549 = vld [vmem:[#allocation8 + $0x70] sm:$0xff]
      %v550 = vld [vmem:[#allocation8 + $0x78] sm:$0xff]
      %v551 = vsub.s32 %v307, 1536
      %552 = vset.pattern.permute.xlu0 0
      %553 = vperm.xlu0 %552, %v551
      %v554 = vpop.permute.xlu0 %553
      %vm555 = vcmp.ge.s32.totalorder %v319, %v554
      %vm556 = vcmp.ge.s32.totalorder %v320, %v554
      %vm557 = vcmp.ge.s32.totalorder %v321, %v554
      %vm558 = vcmp.ge.s32.totalorder %v322, %v554
      %v559 = vsub.s32 %v311, 1536
      %560 = vset.pattern.permute.xlu0 0
      %561 = vperm.xlu0 %560, %v559
      %v562 = vpop.permute.xlu0 %561
      %vm563 = vcmp.lt.s32.totalorder %v319, %v562
      %vm564 = vcmp.lt.s32.totalorder %v320, %v562
      %vm565 = vcmp.lt.s32.totalorder %v321, %v562
      %vm566 = vcmp.lt.s32.totalorder %v322, %v562
      %vm567 = vmand %vm555, %vm563
      %vm568 = vmand %vm556, %vm564
      %vm569 = vmand %vm557, %vm565
      %vm570 = vmand %vm558, %vm566
      %v571 = vsub.s32 %v315, 1536
      %572 = vset.pattern.permute.xlu0 0
      %573 = vperm.xlu0 %572, %v571
      %v574 = vpop.permute.xlu0 %573
      %vm575 = vcmp.ge.s32.totalorder %v319, %v574
      %vm576 = vcmp.ge.s32.totalorder %v320, %v574
      %vm577 = vcmp.ge.s32.totalorder %v321, %v574
      %vm578 = vcmp.ge.s32.totalorder %v322, %v574
      %v579 = vsub.s32 %v317, 1536
      %580 = vset.pattern.permute.xlu0 0
      %581 = vperm.xlu0 %580, %v579
      %v582 = vpop.permute.xlu0 %581
      %vm583 = vcmp.lt.s32.totalorder %v319, %v582
      %vm584 = vcmp.lt.s32.totalorder %v320, %v582
      %vm585 = vcmp.lt.s32.totalorder %v321, %v582
      %vm586 = vcmp.lt.s32.totalorder %v322, %v582
      %vm587 = vmand %vm575, %vm583
      %vm588 = vmand %vm576, %vm584
      %vm589 = vmand %vm577, %vm585
      %vm590 = vmand %vm578, %vm586
      %v591 = vmul.f32 %v543, %v543
      %v592 = vmul.f32 %v544, %v544
      %v593 = vmul.f32 %v545, %v545
      %v594 = vmul.f32 %v546, %v546
      %v595 = vsel %vm567, %v591, 0.0
      %v596 = vsel %vm568, %v592, 0.0
      %v597 = vsel %vm569, %v593, 0.0
      %v598 = vsel %vm570, %v594, 0.0
      %v599 = vadd.f32 %v527, %v595
      %v600 = vadd.f32 %v528, %v596
      %v601 = vadd.f32 %v529, %v597
      %v602 = vadd.f32 %v530, %v598
      %v603 = vmul.f32 %v547, %v547
      %v604 = vmul.f32 %v548, %v548
      %v605 = vmul.f32 %v549, %v549
      %v606 = vmul.f32 %v550, %v550
      %v607 = vsel %vm587, %v603, 0.0
      %v608 = vsel %vm588, %v604, 0.0
      %v609 = vsel %vm589, %v605, 0.0
      %v610 = vsel %vm590, %v606, 0.0
      %v611 = vadd.f32 %v539, %v607
      %v612 = vadd.f32 %v540, %v608
      %v613 = vadd.f32 %v541, %v609
      %v614 = vadd.f32 %v542, %v610
      %v615 = vld [vmem:[#allocation6 + $0x80] sm:$0xff]
      %v616 = vld [vmem:[#allocation6 + $0x88] sm:$0xff]
      %v617 = vld [vmem:[#allocation6 + $0x90] sm:$0xff]
      %v618 = vld [vmem:[#allocation6 + $0x98] sm:$0xff]
      %v619 = vld [vmem:[#allocation8 + $0x80] sm:$0xff]
      %v620 = vld [vmem:[#allocation8 + $0x88] sm:$0xff]
      %v621 = vld [vmem:[#allocation8 + $0x90] sm:$0xff]
      %v622 = vld [vmem:[#allocation8 + $0x98] sm:$0xff]
      %v623 = vsub.s32 %v307, 2048
      %624 = vset.pattern.permute.xlu0 0
      %625 = vperm.xlu0 %624, %v623
      %v626 = vpop.permute.xlu0 %625
      %vm627 = vcmp.ge.s32.totalorder %v319, %v626
      %vm628 = vcmp.ge.s32.totalorder %v320, %v626
      %vm629 = vcmp.ge.s32.totalorder %v321, %v626
      %vm630 = vcmp.ge.s32.totalorder %v322, %v626
      %v631 = vsub.s32 %v311, 2048
      %632 = vset.pattern.permute.xlu0 0
      %633 = vperm.xlu0 %632, %v631
      %v634 = vpop.permute.xlu0 %633
      %vm635 = vcmp.lt.s32.totalorder %v319, %v634
      %vm636 = vcmp.lt.s32.totalorder %v320, %v634
      %vm637 = vcmp.lt.s32.totalorder %v321, %v634
      %vm638 = vcmp.lt.s32.totalorder %v322, %v634
      %vm639 = vmand %vm627, %vm635
      %vm640 = vmand %vm628, %vm636
      %vm641 = vmand %vm629, %vm637
      %vm642 = vmand %vm630, %vm638
      %v643 = vsub.s32 %v315, 2048
      %644 = vset.pattern.permute.xlu0 0
      %645 = vperm.xlu0 %644, %v643
      %v646 = vpop.permute.xlu0 %645
      %vm647 = vcmp.ge.s32.totalorder %v319, %v646
      %vm648 = vcmp.ge.s32.totalorder %v320, %v646
      %vm649 = vcmp.ge.s32.totalorder %v321, %v646
      %vm650 = vcmp.ge.s32.totalorder %v322, %v646
      %v651 = vsub.s32 %v317, 2048
      %652 = vset.pattern.permute.xlu0 0
      %653 = vperm.xlu0 %652, %v651
      %v654 = vpop.permute.xlu0 %653
      %vm655 = vcmp.lt.s32.totalorder %v319, %v654
      %vm656 = vcmp.lt.s32.totalorder %v320, %v654
      %vm657 = vcmp.lt.s32.totalorder %v321, %v654
      %vm658 = vcmp.lt.s32.totalorder %v322, %v654
      %vm659 = vmand %vm647, %vm655
      %vm660 = vmand %vm648, %vm656
      %vm661 = vmand %vm649, %vm657
      %vm662 = vmand %vm650, %vm658
      %v663 = vmul.f32 %v615, %v615
      %v664 = vmul.f32 %v616, %v616
      %v665 = vmul.f32 %v617, %v617
      %v666 = vmul.f32 %v618, %v618
      %v667 = vsel %vm639, %v663, 0.0
      %v668 = vsel %vm640, %v664, 0.0
      %v669 = vsel %vm641, %v665, 0.0
      %v670 = vsel %vm642, %v666, 0.0
      %v671 = vadd.f32 %v599, %v667
      %v672 = vadd.f32 %v600, %v668
      %v673 = vadd.f32 %v601, %v669
      %v674 = vadd.f32 %v602, %v670
      %v675 = vmul.f32 %v619, %v619
      %v676 = vmul.f32 %v620, %v620
      %v677 = vmul.f32 %v621, %v621
      %v678 = vmul.f32 %v622, %v622
      %v679 = vsel %vm659, %v675, 0.0
      %v680 = vsel %vm660, %v676, 0.0
      %v681 = vsel %vm661, %v677, 0.0
      %v682 = vsel %vm662, %v678, 0.0
      %v683 = vadd.f32 %v611, %v679
      %v684 = vadd.f32 %v612, %v680
      %v685 = vadd.f32 %v613, %v681
      %v686 = vadd.f32 %v614, %v682
      %v687 = vld [vmem:[#allocation6 + $0xa0] sm:$0xff]
      %v688 = vld [vmem:[#allocation6 + $0xa8] sm:$0xff]
      %v689 = vld [vmem:[#allocation6 + $0xb0] sm:$0xff]
      %v690 = vld [vmem:[#allocation6 + $0xb8] sm:$0xff]
      %v691 = vld [vmem:[#allocation8 + $0xa0] sm:$0xff]
      %v692 = vld [vmem:[#allocation8 + $0xa8] sm:$0xff]
      %v693 = vld [vmem:[#allocation8 + $0xb0] sm:$0xff]
      %v694 = vld [vmem:[#allocation8 + $0xb8] sm:$0xff]
      %v695 = vsub.s32 %v307, 2560
      %696 = vset.pattern.permute.xlu0 0
      %697 = vperm.xlu0 %696, %v695
      %v698 = vpop.permute.xlu0 %697
      %vm699 = vcmp.ge.s32.totalorder %v319, %v698
      %vm700 = vcmp.ge.s32.totalorder %v320, %v698
      %vm701 = vcmp.ge.s32.totalorder %v321, %v698
      %vm702 = vcmp.ge.s32.totalorder %v322, %v698
      %v703 = vsub.s32 %v311, 2560
      %704 = vset.pattern.permute.xlu0 0
      %705 = vperm.xlu0 %704, %v703
      %v706 = vpop.permute.xlu0 %705
      %vm707 = vcmp.lt.s32.totalorder %v319, %v706
      %vm708 = vcmp.lt.s32.totalorder %v320, %v706
      %vm709 = vcmp.lt.s32.totalorder %v321, %v706
      %vm710 = vcmp.lt.s32.totalorder %v322, %v706
      %vm711 = vmand %vm699, %vm707
      %vm712 = vmand %vm700, %vm708
      %vm713 = vmand %vm701, %vm709
      %vm714 = vmand %vm702, %vm710
      %v715 = vsub.s32 %v315, 2560
      %716 = vset.pattern.permute.xlu0 0
      %717 = vperm.xlu0 %716, %v715
      %v718 = vpop.permute.xlu0 %717
      %vm719 = vcmp.ge.s32.totalorder %v319, %v718
      %vm720 = vcmp.ge.s32.totalorder %v320, %v718
      %vm721 = vcmp.ge.s32.totalorder %v321, %v718
      %vm722 = vcmp.ge.s32.totalorder %v322, %v718
      %v723 = vsub.s32 %v317, 2560
      %724 = vset.pattern.permute.xlu0 0
      %725 = vperm.xlu0 %724, %v723
      %v726 = vpop.permute.xlu0 %725
      %vm727 = vcmp.lt.s32.totalorder %v319, %v726
      %vm728 = vcmp.lt.s32.totalorder %v320, %v726
      %vm729 = vcmp.lt.s32.totalorder %v321, %v726
      %vm730 = vcmp.lt.s32.totalorder %v322, %v726
      %vm731 = vmand %vm719, %vm727
      %vm732 = vmand %vm720, %vm728
      %vm733 = vmand %vm721, %vm729
      %vm734 = vmand %vm722, %vm730
      %v735 = vmul.f32 %v687, %v687
      %v736 = vmul.f32 %v688, %v688
      %v737 = vmul.f32 %v689, %v689
      %v738 = vmul.f32 %v690, %v690
      %v739 = vsel %vm711, %v735, 0.0
      %v740 = vsel %vm712, %v736, 0.0
      %v741 = vsel %vm713, %v737, 0.0
      %v742 = vsel %vm714, %v738, 0.0
      %v743 = vadd.f32 %v671, %v739
      %v744 = vadd.f32 %v672, %v740
      %v745 = vadd.f32 %v673, %v741
      %v746 = vadd.f32 %v674, %v742
      %v747 = vmul.f32 %v691, %v691
      %v748 = vmul.f32 %v692, %v692
      %v749 = vmul.f32 %v693, %v693
      %v750 = vmul.f32 %v694, %v694
      %v751 = vsel %vm731, %v747, 0.0
      %v752 = vsel %vm732, %v748, 0.0
      %v753 = vsel %vm733, %v749, 0.0
      %v754 = vsel %vm734, %v750, 0.0
      %v755 = vadd.f32 %v683, %v751
      %v756 = vadd.f32 %v684, %v752
      %v757 = vadd.f32 %v685, %v753
      %v758 = vadd.f32 %v686, %v754
      %v759 = vld [vmem:[#allocation6 + $0xc0] sm:$0xff]
      %v760 = vld [vmem:[#allocation6 + $0xc8] sm:$0xff]
      %v761 = vld [vmem:[#allocation6 + $0xd0] sm:$0xff]
      %v762 = vld [vmem:[#allocation6 + $0xd8] sm:$0xff]
      %v763 = vld [vmem:[#allocation8 + $0xc0] sm:$0xff]
      %v764 = vld [vmem:[#allocation8 + $0xc8] sm:$0xff]
      %v765 = vld [vmem:[#allocation8 + $0xd0] sm:$0xff]
      %v766 = vld [vmem:[#allocation8 + $0xd8] sm:$0xff]
      %v767 = vsub.s32 %v307, 3072
      %768 = vset.pattern.permute.xlu0 0
      %769 = vperm.xlu0 %768, %v767
      %v770 = vpop.permute.xlu0 %769
      %vm771 = vcmp.ge.s32.totalorder %v319, %v770
      %vm772 = vcmp.ge.s32.totalorder %v320, %v770
      %vm773 = vcmp.ge.s32.totalorder %v321, %v770
      %vm774 = vcmp.ge.s32.totalorder %v322, %v770
      %v775 = vsub.s32 %v311, 3072
      %776 = vset.pattern.permute.xlu0 0
      %777 = vperm.xlu0 %776, %v775
      %v778 = vpop.permute.xlu0 %777
      %vm779 = vcmp.lt.s32.totalorder %v319, %v778
      %vm780 = vcmp.lt.s32.totalorder %v320, %v778
      %vm781 = vcmp.lt.s32.totalorder %v321, %v778
      %vm782 = vcmp.lt.s32.totalorder %v322, %v778
      %vm783 = vmand %vm771, %vm779
      %vm784 = vmand %vm772, %vm780
      %vm785 = vmand %vm773, %vm781
      %vm786 = vmand %vm774, %vm782
      %v787 = vsub.s32 %v315, 3072
      %788 = vset.pattern.permute.xlu0 0
      %789 = vperm.xlu0 %788, %v787
      %v790 = vpop.permute.xlu0 %789
      %vm791 = vcmp.ge.s32.totalorder %v319, %v790
      %vm792 = vcmp.ge.s32.totalorder %v320, %v790
      %vm793 = vcmp.ge.s32.totalorder %v321, %v790
      %vm794 = vcmp.ge.s32.totalorder %v322, %v790
      %v795 = vsub.s32 %v317, 3072
      %796 = vset.pattern.permute.xlu0 0
      %797 = vperm.xlu0 %796, %v795
      %v798 = vpop.permute.xlu0 %797
      %vm799 = vcmp.lt.s32.totalorder %v319, %v798
      %vm800 = vcmp.lt.s32.totalorder %v320, %v798
      %vm801 = vcmp.lt.s32.totalorder %v321, %v798
      %vm802 = vcmp.lt.s32.totalorder %v322, %v798
      %vm803 = vmand %vm791, %vm799
      %vm804 = vmand %vm792, %vm800
      %vm805 = vmand %vm793, %vm801
      %vm806 = vmand %vm794, %vm802
      %v807 = vmul.f32 %v759, %v759
      %v808 = vmul.f32 %v760, %v760
      %v809 = vmul.f32 %v761, %v761
      %v810 = vmul.f32 %v762, %v762
      %v811 = vsel %vm783, %v807, 0.0
      %v812 = vsel %vm784, %v808, 0.0
      %v813 = vsel %vm785, %v809, 0.0
      %v814 = vsel %vm786, %v810, 0.0
      %v815 = vadd.f32 %v743, %v811
      %v816 = vadd.f32 %v744, %v812
      %v817 = vadd.f32 %v745, %v813
      %v818 = vadd.f32 %v746, %v814
      %v819 = vmul.f32 %v763, %v763
      %v820 = vmul.f32 %v764, %v764
      %v821 = vmul.f32 %v765, %v765
      %v822 = vmul.f32 %v766, %v766
      %v823 = vsel %vm803, %v819, 0.0
      %v824 = vsel %vm804, %v820, 0.0
      %v825 = vsel %vm805, %v821, 0.0
      %v826 = vsel %vm806, %v822, 0.0
      %v827 = vadd.f32 %v755, %v823
      %v828 = vadd.f32 %v756, %v824
      %v829 = vadd.f32 %v757, %v825
      %v830 = vadd.f32 %v758, %v826
      %v831 = vld [vmem:[#allocation6 + $0xe0] sm:$0xff]
      %v832 = vld [vmem:[#allocation6 + $0xe8] sm:$0xff]
      %v833 = vld [vmem:[#allocation6 + $0xf0] sm:$0xff]
      %v834 = vld [vmem:[#allocation6 + $0xf8] sm:$0xff]
      %v835 = vld [vmem:[#allocation8 + $0xe0] sm:$0xff]
      %v836 = vld [vmem:[#allocation8 + $0xe8] sm:$0xff]
      %v837 = vld [vmem:[#allocation8 + $0xf0] sm:$0xff]
      %v838 = vld [vmem:[#allocation8 + $0xf8] sm:$0xff]
      %v839 = vsub.s32 %v307, 3584
      %840 = vset.pattern.permute.xlu0 0
      %841 = vperm.xlu0 %840, %v839
      %v842 = vpop.permute.xlu0 %841
      %vm843 = vcmp.ge.s32.totalorder %v319, %v842
      %vm844 = vcmp.ge.s32.totalorder %v320, %v842
      %vm845 = vcmp.ge.s32.totalorder %v321, %v842
      %vm846 = vcmp.ge.s32.totalorder %v322, %v842
      %v847 = vsub.s32 %v311, 3584
      %848 = vset.pattern.permute.xlu0 0
      %849 = vperm.xlu0 %848, %v847
      %v850 = vpop.permute.xlu0 %849
      %vm851 = vcmp.lt.s32.totalorder %v319, %v850
      %vm852 = vcmp.lt.s32.totalorder %v320, %v850
      %vm853 = vcmp.lt.s32.totalorder %v321, %v850
      %vm854 = vcmp.lt.s32.totalorder %v322, %v850
      %vm855 = vmand %vm843, %vm851
      %vm856 = vmand %vm844, %vm852
      %vm857 = vmand %vm845, %vm853
      %vm858 = vmand %vm846, %vm854
      %v859 = vsub.s32 %v315, 3584
      %860 = vset.pattern.permute.xlu0 0
      %861 = vperm.xlu0 %860, %v859
      %v862 = vpop.permute.xlu0 %861
      %vm863 = vcmp.ge.s32.totalorder %v319, %v862
      %vm864 = vcmp.ge.s32.totalorder %v320, %v862
      %vm865 = vcmp.ge.s32.totalorder %v321, %v862
      %vm866 = vcmp.ge.s32.totalorder %v322, %v862
      %v867 = vsub.s32 %v317, 3584
      %868 = vset.pattern.permute.xlu0 0
      %869 = vperm.xlu0 %868, %v867
      %v870 = vpop.permute.xlu0 %869
      %vm871 = vcmp.lt.s32.totalorder %v319, %v870
      %vm872 = vcmp.lt.s32.totalorder %v320, %v870
      %vm873 = vcmp.lt.s32.totalorder %v321, %v870
      %vm874 = vcmp.lt.s32.totalorder %v322, %v870
      %vm875 = vmand %vm863, %vm871
      %vm876 = vmand %vm864, %vm872
      %vm877 = vmand %vm865, %vm873
      %vm878 = vmand %vm866, %vm874
      %v879 = vmul.f32 %v831, %v831
      %v880 = vmul.f32 %v832, %v832
      %v881 = vmul.f32 %v833, %v833
      %v882 = vmul.f32 %v834, %v834
      %v883 = vsel %vm855, %v879, 0.0
      %v884 = vsel %vm856, %v880, 0.0
      %v885 = vsel %vm857, %v881, 0.0
      %v886 = vsel %vm858, %v882, 0.0
      %v887 = vadd.f32 %v815, %v883
      %v888 = vadd.f32 %v816, %v884
      %v889 = vadd.f32 %v817, %v885
      %v890 = vadd.f32 %v818, %v886
      %v891 = vmul.f32 %v835, %v835
      %v892 = vmul.f32 %v836, %v836
      %v893 = vmul.f32 %v837, %v837
      %v894 = vmul.f32 %v838, %v838
      %v895 = vsel %vm875, %v891, 0.0
      %v896 = vsel %vm876, %v892, 0.0
      %v897 = vsel %vm877, %v893, 0.0
      %v898 = vsel %vm878, %v894, 0.0
      %v899 = vadd.f32 %v827, %v895
      %v900 = vadd.f32 %v828, %v896
      %v901 = vadd.f32 %v829, %v897
      %v902 = vadd.f32 %v830, %v898
      %903 = vst [vmem:[#allocation2] sm:$0xff] %v887
      %904 = vst [vmem:[#allocation2 + $0x8] sm:$0xff] %v888
      %905 = vst [vmem:[#allocation2 + $0x10] sm:$0xff] %v889
      %906 = vst [vmem:[#allocation2 + $0x18] sm:$0xff] %v890
      %907 = vst [vmem:[#allocation3] sm:$0xff] %v899
      %908 = vst [vmem:[#allocation3 + $0x8] sm:$0xff] %v900
      %909 = vst [vmem:[#allocation3 + $0x10] sm:$0xff] %v901
      %910 = vst [vmem:[#allocation3 + $0x18] sm:$0xff] %v902
    $region33: #{tpu_custom_call.1} parent=1 // pred_fallthru
      _
    // Predicated region
    $region34: #{tpu_custom_call.1} parent=1 // pred_check
      %p911 = pneg %p68
    $region35: #{tpu_custom_call.1} parent=1 // pred_check_branch
      %913 = sbr.rel (%p911) target = $region37
    $region36: #{tpu_custom_call.1} parent=1 // pred_region
      %v914 = vld [vmem:[#allocation2] sm:$0xff]
      %v915 = vld [vmem:[#allocation2 + $0x8] sm:$0xff]
      %v916 = vld [vmem:[#allocation2 + $0x10] sm:$0xff]
      %v917 = vld [vmem:[#allocation2 + $0x18] sm:$0xff]
      %v918 = vadd.f32 %v914, %v915
      %v919 = vadd.f32 %v918, %v916
      %v920 = vadd.f32 %v919, %v917
      %921 = vadd.xlane.f32.xlu0 %v920
      %v922 = vpop.xlane.xlu0 %921
      %vm923 = vcmask 7168
      %924 = vst.msk [vmem:[%s4] sm:$0xff] %vm923, %v922
      %v925 = vld [vmem:[#allocation3] sm:$0xff]
      %v926 = vld [vmem:[#allocation3 + $0x8] sm:$0xff]
      %v927 = vld [vmem:[#allocation3 + $0x10] sm:$0xff]
      %v928 = vld [vmem:[#allocation3 + $0x18] sm:$0xff]
      %v929 = vadd.f32 %v925, %v926
      %v930 = vadd.f32 %v929, %v927
      %v931 = vadd.f32 %v930, %v928
      %932 = vadd.xlane.f32.xlu0 %v931
      %v933 = vpop.xlane.xlu0 %932
      %934 = vst.msk [vmem:[%s5] sm:$0xff] %vm923, %v933
    $region37: #{tpu_custom_call.1} parent=1 // pred_fallthru
      _
    // Predicated region
    $region38: #{tpu_custom_call.1} parent=1 // pred_check
      _
    $region39: #{tpu_custom_call.1} parent=1 // pred_check_branch
      %936 = sbr.rel (0) target = $region41
    $region40: #{tpu_custom_call.1} parent=1 // pred_region
      _
    $region41: #{tpu_custom_call.1} parent=1 // pred_fallthru
      _
    // Predicated region
    $region42: #{tpu_custom_call.1} parent=1 // pred_check
      _
    $region43: #{tpu_custom_call.1} parent=1 // pred_check_branch
      %938 = sbr.rel (0) target = $region45
    $region44: #{tpu_custom_call.1} parent=1 // pred_region
      _
    $region45: #{tpu_custom_call.1} parent=1 // pred_fallthru
      _
    // Predicated region
    $region46: #{tpu_custom_call.1} parent=1 // pred_check
      _
    $region47: #{tpu_custom_call.1} parent=1 // pred_check_branch
      %940 = sbr.rel (0) target = $region49
    $region48: #{tpu_custom_call.1} parent=1 // pred_region
      _
    $region49: #{tpu_custom_call.1} parent=1 // pred_fallthru
      _
    // Predicated region
    $region50: #{tpu_custom_call.1} parent=1 // pred_check
      _
    $region51: #{tpu_custom_call.1} parent=1 // pred_check_branch
      %942 = sbr.rel (0) target = $region53
    $region52: #{tpu_custom_call.1} parent=1 // pred_region
      _
    $region53: #{tpu_custom_call.1} parent=1 // pred_fallthru
      _
    %943 = vsyncpa [#allocation7], 1
    %944 = vsyncpa [#allocation9], 1

</llo_original>
